<compile_context>
chip_gen: v7x
topology: tpu7x:2x2x1
jax: 0.10.0
libtpu: 0.0.40
codegen_flags: <defaults>
</compile_context>

<pallas_src>
import jax
import jax.numpy as jnp
from jax import lax
from jax.experimental import pallas as pl
from jax.experimental.pallas import tpu as pltpu


def _seq2seq_kernel(enc_x_ref, dec_x_ref, h0_ref,
                    wih_e_ref, whh_e_ref, b_e_ref,
                    wih_d_ref, whh_d_ref, b_d_ref,
                    wfc_ref, bfc_ref,
                    out_ref):
    """Full forward (encoder recurrence, decoder recurrence, fc) in one kernel.

    enc_x_ref: [B, T_enc, C]   (batch-first, as handed to the module)
    dec_x_ref: [B, T_dec, C]
    h0_ref:    [B, H]
    out_ref:   [T_dec * B, C]  (reshaped to [T_dec, B, C] by the wrapper)
    """
    B, T_enc, C = enc_x_ref.shape
    _, T_dec, _ = dec_x_ref.shape
    H = h0_ref.shape[-1]

    # ---- Hoisted input projections: one matmul per RNN, bias folded in ----
    enc_flat = enc_x_ref[...].reshape(B * T_enc, C)
    xw_enc = (jnp.dot(enc_flat, wih_e_ref[...],
                      preferred_element_type=jnp.float32)
              + b_e_ref[...]).reshape(B, T_enc, H)

    dec_flat = dec_x_ref[...].reshape(B * T_dec, C)
    xw_dec = (jnp.dot(dec_flat, wih_d_ref[...],
                      preferred_element_type=jnp.float32)
              + b_d_ref[...]).reshape(B, T_dec, H)

    whh_e = whh_e_ref[...]
    whh_d = whh_d_ref[...]

    h = h0_ref[...]                                    # [B, H]

    # ---- Encoder recurrence: fully unrolled, static time indices ----
    for t in range(T_enc):
        h = jnp.tanh(xw_enc[:, t, :]
                     + jnp.dot(h, whh_e, preferred_element_type=jnp.float32))

    # ---- Decoder recurrence: fully unrolled; collect hidden states ----
    hs = []
    for t in range(T_dec):
        h = jnp.tanh(xw_dec[:, t, :]
                     + jnp.dot(h, whh_d, preferred_element_type=jnp.float32))
        hs.append(h)

    # Rows ordered (t, b): matches a time-major [T_dec, B, H] flattening.
    h_all = jnp.concatenate(hs, axis=0)                # [T_dec * B, H]

    # ---- FC hoisted out of the loop: one matmul + one store ----
    out = (jnp.dot(h_all, wfc_ref[...], preferred_element_type=jnp.float32)
           + bfc_ref[...])                             # [T_dec * B, C]
    out_ref[...] = out.astype(out_ref.dtype)


def seq2seq_forward(params, enc_input, enc_hidden, dec_input):
    """enc_input: [B, T_enc, C], enc_hidden: [1, B, H], dec_input: [B, T_dec, C]
       returns [T_dec, B, C] (same as the PyTorch module's forward)."""
    batch, t_dec, n_class = dec_input.shape
    h0 = enc_hidden[0]                                 # [B, H]

    vmem = pl.BlockSpec(memory_space=pltpu.MemorySpace.VMEM)

    out_flat = pl.pallas_call(
        _seq2seq_kernel,
        out_shape=jax.ShapeDtypeStruct((t_dec * batch, n_class), jnp.float32),
        in_specs=[vmem] * 11,
        out_specs=vmem,
    )(
        enc_input, dec_input, h0,
        params["wih_e"], params["whh_e"], params["b_e"],
        params["wih_d"], params["whh_d"], params["b_d"],
        params["wfc"], params["bfc"],
    )
    # Free (row-major) reshape outside the kernel back to the PyTorch shape.
    return out_flat.reshape(t_dec, batch, n_class)


def init_params(key, n_class, n_hidden):
    """Deterministic parameter init mirroring the PyTorch module's shapes.
    Weights are stored pre-transposed so the kernel computes x @ W; the two
    RNN biases (b_ih, b_hh) are fused into a single bias."""
    ks = jax.random.split(key, 10)
    scale = 0.1

    def u(k, shape):
        return jax.random.uniform(k, shape, jnp.float32, -scale, scale)

    return {
        # encoder nn.RNN: weight_ih_l0 [H, C] -> stored as [C, H]
        "wih_e": u(ks[0], (n_class, n_hidden)),
        "whh_e": u(ks[1], (n_hidden, n_hidden)),
        "b_e":   u(ks[2], (1, n_hidden)) + u(ks[3], (1, n_hidden)),  # b_ih + b_hh
        # decoder nn.RNN
        "wih_d": u(ks[4], (n_class, n_hidden)),
        "whh_d": u(ks[5], (n_hidden, n_hidden)),
        "b_d":   u(ks[6], (1, n_hidden)) + u(ks[7], (1, n_hidden)),
        # fc: nn.Linear(n_hidden, n_class): weight [C, H] -> stored as [H, C]
        "wfc":   u(ks[8], (n_hidden, n_class)),
        "bfc":   u(ks[9], (1, n_class)),
    }


def _reference_forward(params, enc_input, enc_hidden, dec_input):
    """Pure-JAX reference with identical semantics (sanity check)."""
    enc_x = jnp.transpose(enc_input, (1, 0, 2))
    dec_x = jnp.transpose(dec_input, (1, 0, 2))
    h = enc_hidden[0]

    def enc_cell(h, x):
        h = jnp.tanh(x @ params["wih_e"] + h @ params["whh_e"] + params["b_e"])
        return h, None

    h, _ = lax.scan(enc_cell, h, enc_x)

    def dec_cell(h, x):
        h = jnp.tanh(x @ params["wih_d"] + h @ params["whh_d"] + params["b_d"])
        return h, h

    _, outs = lax.scan(dec_cell, h, dec_x)             # [T_dec, B, H]
    return outs @ params["wfc"] + params["bfc"]        # [T_dec, B, n_class]


if __name__ == "__main__":
    # small shapes consistent with the module's forward
    batch, seq_len, n_class, n_hidden = 2, 8, 16, 32

    key = jax.random.PRNGKey(0)
    k_p, k_e, k_h, k_d = jax.random.split(key, 4)

    params = init_params(k_p, n_class, n_hidden)

    enc_input = jax.random.normal(k_e, (batch, seq_len, n_class), jnp.float32)
    enc_hidden = jax.random.normal(k_h, (1, batch, n_hidden), jnp.float32)
    dec_input = jax.random.normal(k_d, (batch, seq_len, n_class), jnp.float32)

    out = seq2seq_forward(params, enc_input, enc_hidden, dec_input)
    out = jax.block_until_ready(out)

    ref = _reference_forward(params, enc_input, enc_hidden, dec_input)
    assert out.shape == (seq_len, batch, n_class)
    assert jnp.allclose(out, ref, atol=1e-5, rtol=1e-5)

    print("KERNEL_OK")
</pallas_src>

<mosaic_0001>
module attributes {stable_mosaic.version = 11 : i64} {
  func.func @_seq2seq_kernel(%arg0: memref<2x8x16xf32, #tpu.memory_space<vmem>>, %arg1: memref<2x8x16xf32, #tpu.memory_space<vmem>>, %arg2: memref<2x32xf32, #tpu.memory_space<vmem>>, %arg3: memref<16x32xf32, #tpu.memory_space<vmem>>, %arg4: memref<32x32xf32, #tpu.memory_space<vmem>>, %arg5: memref<1x32xf32, #tpu.memory_space<vmem>>, %arg6: memref<16x32xf32, #tpu.memory_space<vmem>>, %arg7: memref<32x32xf32, #tpu.memory_space<vmem>>, %arg8: memref<1x32xf32, #tpu.memory_space<vmem>>, %arg9: memref<32x16xf32, #tpu.memory_space<vmem>>, %arg10: memref<1x16xf32, #tpu.memory_space<vmem>>, %arg11: memref<16x16xf32, #tpu.memory_space<vmem>>) attributes {dimension_semantics = [], scalar_prefetch = 0 : i64, scratch_operands = 0 : i64, tpu.core_type = #tpu.core_type<tc>} {
    %c0 = arith.constant 0 : index
    %c0_0 = arith.constant 0 : index
    %c0_1 = arith.constant 0 : index
    %0 = vector.load %arg0[%c0, %c0_0, %c0_1] : memref<2x8x16xf32, #tpu.memory_space<vmem>>, vector<2x8x16xf32>
    %1 = vector.shape_cast %0 : vector<2x8x16xf32> to vector<16x16xf32>
    %c0_2 = arith.constant 0 : index
    %c0_3 = arith.constant 0 : index
    %2 = vector.load %arg3[%c0_2, %c0_3] : memref<16x32xf32, #tpu.memory_space<vmem>>, vector<16x32xf32>
    %cst = arith.constant dense<0.000000e+00> : vector<16x32xf32>
    %3 = tpu.matmul %1, %2, %cst {dimension_numbers = #tpu.dot_dimension_numbers<[1], [0], [0], [1], [0, 0, 1, 1], [], []>} : vector<16x16xf32>, vector<16x32xf32>, vector<16x32xf32> -> vector<16x32xf32>
    %c0_4 = arith.constant 0 : index
    %c0_5 = arith.constant 0 : index
    %4 = vector.load %arg5[%c0_4, %c0_5] : memref<1x32xf32, #tpu.memory_space<vmem>>, vector<1x32xf32>
    %5 = vector.broadcast %4 : vector<1x32xf32> to vector<16x32xf32>
    %6 = arith.addf %3, %5 : vector<16x32xf32>
    %7 = vector.shape_cast %6 : vector<16x32xf32> to vector<2x8x32xf32>
    %c0_6 = arith.constant 0 : index
    %c0_7 = arith.constant 0 : index
    %c0_8 = arith.constant 0 : index
    %8 = vector.load %arg1[%c0_6, %c0_7, %c0_8] : memref<2x8x16xf32, #tpu.memory_space<vmem>>, vector<2x8x16xf32>
    %9 = vector.shape_cast %8 : vector<2x8x16xf32> to vector<16x16xf32>
    %c0_9 = arith.constant 0 : index
    %c0_10 = arith.constant 0 : index
    %10 = vector.load %arg6[%c0_9, %c0_10] : memref<16x32xf32, #tpu.memory_space<vmem>>, vector<16x32xf32>
    %cst_11 = arith.constant dense<0.000000e+00> : vector<16x32xf32>
    %11 = tpu.matmul %9, %10, %cst_11 {dimension_numbers = #tpu.dot_dimension_numbers<[1], [0], [0], [1], [0, 0, 1, 1], [], []>} : vector<16x16xf32>, vector<16x32xf32>, vector<16x32xf32> -> vector<16x32xf32>
    %c0_12 = arith.constant 0 : index
    %c0_13 = arith.constant 0 : index
    %12 = vector.load %arg8[%c0_12, %c0_13] : memref<1x32xf32, #tpu.memory_space<vmem>>, vector<1x32xf32>
    %13 = vector.broadcast %12 : vector<1x32xf32> to vector<16x32xf32>
    %14 = arith.addf %11, %13 : vector<16x32xf32>
    %15 = vector.shape_cast %14 : vector<16x32xf32> to vector<2x8x32xf32>
    %c0_14 = arith.constant 0 : index
    %c0_15 = arith.constant 0 : index
    %16 = vector.load %arg4[%c0_14, %c0_15] : memref<32x32xf32, #tpu.memory_space<vmem>>, vector<32x32xf32>
    %c0_16 = arith.constant 0 : index
    %c0_17 = arith.constant 0 : index
    %17 = vector.load %arg7[%c0_16, %c0_17] : memref<32x32xf32, #tpu.memory_space<vmem>>, vector<32x32xf32>
    %c0_18 = arith.constant 0 : index
    %c0_19 = arith.constant 0 : index
    %18 = vector.load %arg2[%c0_18, %c0_19] : memref<2x32xf32, #tpu.memory_space<vmem>>, vector<2x32xf32>
    %19 = vector.extract_strided_slice %7 {offsets = [0, 0, 0], sizes = [2, 1, 32], strides = [1, 1, 1]} : vector<2x8x32xf32> to vector<2x1x32xf32>
    %20 = vector.shape_cast %19 : vector<2x1x32xf32> to vector<2x32xf32>
    %cst_20 = arith.constant dense<0.000000e+00> : vector<2x32xf32>
    %21 = tpu.matmul %18, %16, %cst_20 {dimension_numbers = #tpu.dot_dimension_numbers<[1], [0], [0], [1], [0, 0, 1, 1], [], []>} : vector<2x32xf32>, vector<32x32xf32>, vector<2x32xf32> -> vector<2x32xf32>
    %22 = arith.addf %20, %21 : vector<2x32xf32>
    %23 = math.tanh %22 : vector<2x32xf32>
    %24 = vector.extract_strided_slice %7 {offsets = [0, 1, 0], sizes = [2, 1, 32], strides = [1, 1, 1]} : vector<2x8x32xf32> to vector<2x1x32xf32>
    %25 = vector.shape_cast %24 : vector<2x1x32xf32> to vector<2x32xf32>
    %cst_21 = arith.constant dense<0.000000e+00> : vector<2x32xf32>
    %26 = tpu.matmul %23, %16, %cst_21 {dimension_numbers = #tpu.dot_dimension_numbers<[1], [0], [0], [1], [0, 0, 1, 1], [], []>} : vector<2x32xf32>, vector<32x32xf32>, vector<2x32xf32> -> vector<2x32xf32>
    %27 = arith.addf %25, %26 : vector<2x32xf32>
    %28 = math.tanh %27 : vector<2x32xf32>
    %29 = vector.extract_strided_slice %7 {offsets = [0, 2, 0], sizes = [2, 1, 32], strides = [1, 1, 1]} : vector<2x8x32xf32> to vector<2x1x32xf32>
    %30 = vector.shape_cast %29 : vector<2x1x32xf32> to vector<2x32xf32>
    %cst_22 = arith.constant dense<0.000000e+00> : vector<2x32xf32>
    %31 = tpu.matmul %28, %16, %cst_22 {dimension_numbers = #tpu.dot_dimension_numbers<[1], [0], [0], [1], [0, 0, 1, 1], [], []>} : vector<2x32xf32>, vector<32x32xf32>, vector<2x32xf32> -> vector<2x32xf32>
    %32 = arith.addf %30, %31 : vector<2x32xf32>
    %33 = math.tanh %32 : vector<2x32xf32>
    %34 = vector.extract_strided_slice %7 {offsets = [0, 3, 0], sizes = [2, 1, 32], strides = [1, 1, 1]} : vector<2x8x32xf32> to vector<2x1x32xf32>
    %35 = vector.shape_cast %34 : vector<2x1x32xf32> to vector<2x32xf32>
    %cst_23 = arith.constant dense<0.000000e+00> : vector<2x32xf32>
    %36 = tpu.matmul %33, %16, %cst_23 {dimension_numbers = #tpu.dot_dimension_numbers<[1], [0], [0], [1], [0, 0, 1, 1], [], []>} : vector<2x32xf32>, vector<32x32xf32>, vector<2x32xf32> -> vector<2x32xf32>
    %37 = arith.addf %35, %36 : vector<2x32xf32>
    %38 = math.tanh %37 : vector<2x32xf32>
    %39 = vector.extract_strided_slice %7 {offsets = [0, 4, 0], sizes = [2, 1, 32], strides = [1, 1, 1]} : vector<2x8x32xf32> to vector<2x1x32xf32>
    %40 = vector.shape_cast %39 : vector<2x1x32xf32> to vector<2x32xf32>
    %cst_24 = arith.constant dense<0.000000e+00> : vector<2x32xf32>
    %41 = tpu.matmul %38, %16, %cst_24 {dimension_numbers = #tpu.dot_dimension_numbers<[1], [0], [0], [1], [0, 0, 1, 1], [], []>} : vector<2x32xf32>, vector<32x32xf32>, vector<2x32xf32> -> vector<2x32xf32>
    %42 = arith.addf %40, %41 : vector<2x32xf32>
    %43 = math.tanh %42 : vector<2x32xf32>
    %44 = vector.extract_strided_slice %7 {offsets = [0, 5, 0], sizes = [2, 1, 32], strides = [1, 1, 1]} : vector<2x8x32xf32> to vector<2x1x32xf32>
    %45 = vector.shape_cast %44 : vector<2x1x32xf32> to vector<2x32xf32>
    %cst_25 = arith.constant dense<0.000000e+00> : vector<2x32xf32>
    %46 = tpu.matmul %43, %16, %cst_25 {dimension_numbers = #tpu.dot_dimension_numbers<[1], [0], [0], [1], [0, 0, 1, 1], [], []>} : vector<2x32xf32>, vector<32x32xf32>, vector<2x32xf32> -> vector<2x32xf32>
    %47 = arith.addf %45, %46 : vector<2x32xf32>
    %48 = math.tanh %47 : vector<2x32xf32>
    %49 = vector.extract_strided_slice %7 {offsets = [0, 6, 0], sizes = [2, 1, 32], strides = [1, 1, 1]} : vector<2x8x32xf32> to vector<2x1x32xf32>
    %50 = vector.shape_cast %49 : vector<2x1x32xf32> to vector<2x32xf32>
    %cst_26 = arith.constant dense<0.000000e+00> : vector<2x32xf32>
    %51 = tpu.matmul %48, %16, %cst_26 {dimension_numbers = #tpu.dot_dimension_numbers<[1], [0], [0], [1], [0, 0, 1, 1], [], []>} : vector<2x32xf32>, vector<32x32xf32>, vector<2x32xf32> -> vector<2x32xf32>
    %52 = arith.addf %50, %51 : vector<2x32xf32>
    %53 = math.tanh %52 : vector<2x32xf32>
    %54 = vector.extract_strided_slice %7 {offsets = [0, 7, 0], sizes = [2, 1, 32], strides = [1, 1, 1]} : vector<2x8x32xf32> to vector<2x1x32xf32>
    %55 = vector.shape_cast %54 : vector<2x1x32xf32> to vector<2x32xf32>
    %cst_27 = arith.constant dense<0.000000e+00> : vector<2x32xf32>
    %56 = tpu.matmul %53, %16, %cst_27 {dimension_numbers = #tpu.dot_dimension_numbers<[1], [0], [0], [1], [0, 0, 1, 1], [], []>} : vector<2x32xf32>, vector<32x32xf32>, vector<2x32xf32> -> vector<2x32xf32>
    %57 = arith.addf %55, %56 : vector<2x32xf32>
    %58 = math.tanh %57 : vector<2x32xf32>
    %59 = vector.extract_strided_slice %15 {offsets = [0, 0, 0], sizes = [2, 1, 32], strides = [1, 1, 1]} : vector<2x8x32xf32> to vector<2x1x32xf32>
    %60 = vector.shape_cast %59 : vector<2x1x32xf32> to vector<2x32xf32>
    %cst_28 = arith.constant dense<0.000000e+00> : vector<2x32xf32>
    %61 = tpu.matmul %58, %17, %cst_28 {dimension_numbers = #tpu.dot_dimension_numbers<[1], [0], [0], [1], [0, 0, 1, 1], [], []>} : vector<2x32xf32>, vector<32x32xf32>, vector<2x32xf32> -> vector<2x32xf32>
    %62 = arith.addf %60, %61 : vector<2x32xf32>
    %63 = math.tanh %62 : vector<2x32xf32>
    %64 = vector.extract_strided_slice %15 {offsets = [0, 1, 0], sizes = [2, 1, 32], strides = [1, 1, 1]} : vector<2x8x32xf32> to vector<2x1x32xf32>
    %65 = vector.shape_cast %64 : vector<2x1x32xf32> to vector<2x32xf32>
    %cst_29 = arith.constant dense<0.000000e+00> : vector<2x32xf32>
    %66 = tpu.matmul %63, %17, %cst_29 {dimension_numbers = #tpu.dot_dimension_numbers<[1], [0], [0], [1], [0, 0, 1, 1], [], []>} : vector<2x32xf32>, vector<32x32xf32>, vector<2x32xf32> -> vector<2x32xf32>
    %67 = arith.addf %65, %66 : vector<2x32xf32>
    %68 = math.tanh %67 : vector<2x32xf32>
    %69 = vector.extract_strided_slice %15 {offsets = [0, 2, 0], sizes = [2, 1, 32], strides = [1, 1, 1]} : vector<2x8x32xf32> to vector<2x1x32xf32>
    %70 = vector.shape_cast %69 : vector<2x1x32xf32> to vector<2x32xf32>
    %cst_30 = arith.constant dense<0.000000e+00> : vector<2x32xf32>
    %71 = tpu.matmul %68, %17, %cst_30 {dimension_numbers = #tpu.dot_dimension_numbers<[1], [0], [0], [1], [0, 0, 1, 1], [], []>} : vector<2x32xf32>, vector<32x32xf32>, vector<2x32xf32> -> vector<2x32xf32>
    %72 = arith.addf %70, %71 : vector<2x32xf32>
    %73 = math.tanh %72 : vector<2x32xf32>
    %74 = vector.extract_strided_slice %15 {offsets = [0, 3, 0], sizes = [2, 1, 32], strides = [1, 1, 1]} : vector<2x8x32xf32> to vector<2x1x32xf32>
    %75 = vector.shape_cast %74 : vector<2x1x32xf32> to vector<2x32xf32>
    %cst_31 = arith.constant dense<0.000000e+00> : vector<2x32xf32>
    %76 = tpu.matmul %73, %17, %cst_31 {dimension_numbers = #tpu.dot_dimension_numbers<[1], [0], [0], [1], [0, 0, 1, 1], [], []>} : vector<2x32xf32>, vector<32x32xf32>, vector<2x32xf32> -> vector<2x32xf32>
    %77 = arith.addf %75, %76 : vector<2x32xf32>
    %78 = math.tanh %77 : vector<2x32xf32>
    %79 = vector.extract_strided_slice %15 {offsets = [0, 4, 0], sizes = [2, 1, 32], strides = [1, 1, 1]} : vector<2x8x32xf32> to vector<2x1x32xf32>
    %80 = vector.shape_cast %79 : vector<2x1x32xf32> to vector<2x32xf32>
    %cst_32 = arith.constant dense<0.000000e+00> : vector<2x32xf32>
    %81 = tpu.matmul %78, %17, %cst_32 {dimension_numbers = #tpu.dot_dimension_numbers<[1], [0], [0], [1], [0, 0, 1, 1], [], []>} : vector<2x32xf32>, vector<32x32xf32>, vector<2x32xf32> -> vector<2x32xf32>
    %82 = arith.addf %80, %81 : vector<2x32xf32>
    %83 = math.tanh %82 : vector<2x32xf32>
    %84 = vector.extract_strided_slice %15 {offsets = [0, 5, 0], sizes = [2, 1, 32], strides = [1, 1, 1]} : vector<2x8x32xf32> to vector<2x1x32xf32>
    %85 = vector.shape_cast %84 : vector<2x1x32xf32> to vector<2x32xf32>
    %cst_33 = arith.constant dense<0.000000e+00> : vector<2x32xf32>
    %86 = tpu.matmul %83, %17, %cst_33 {dimension_numbers = #tpu.dot_dimension_numbers<[1], [0], [0], [1], [0, 0, 1, 1], [], []>} : vector<2x32xf32>, vector<32x32xf32>, vector<2x32xf32> -> vector<2x32xf32>
    %87 = arith.addf %85, %86 : vector<2x32xf32>
    %88 = math.tanh %87 : vector<2x32xf32>
    %89 = vector.extract_strided_slice %15 {offsets = [0, 6, 0], sizes = [2, 1, 32], strides = [1, 1, 1]} : vector<2x8x32xf32> to vector<2x1x32xf32>
    %90 = vector.shape_cast %89 : vector<2x1x32xf32> to vector<2x32xf32>
    %cst_34 = arith.constant dense<0.000000e+00> : vector<2x32xf32>
    %91 = tpu.matmul %88, %17, %cst_34 {dimension_numbers = #tpu.dot_dimension_numbers<[1], [0], [0], [1], [0, 0, 1, 1], [], []>} : vector<2x32xf32>, vector<32x32xf32>, vector<2x32xf32> -> vector<2x32xf32>
    %92 = arith.addf %90, %91 : vector<2x32xf32>
    %93 = math.tanh %92 : vector<2x32xf32>
    %94 = vector.extract_strided_slice %15 {offsets = [0, 7, 0], sizes = [2, 1, 32], strides = [1, 1, 1]} : vector<2x8x32xf32> to vector<2x1x32xf32>
    %95 = vector.shape_cast %94 : vector<2x1x32xf32> to vector<2x32xf32>
    %cst_35 = arith.constant dense<0.000000e+00> : vector<2x32xf32>
    %96 = tpu.matmul %93, %17, %cst_35 {dimension_numbers = #tpu.dot_dimension_numbers<[1], [0], [0], [1], [0, 0, 1, 1], [], []>} : vector<2x32xf32>, vector<32x32xf32>, vector<2x32xf32> -> vector<2x32xf32>
    %97 = arith.addf %95, %96 : vector<2x32xf32>
    %98 = math.tanh %97 : vector<2x32xf32>
    %99 = tpu.concatenate %63, %68, %73, %78, %83, %88, %93, %98 in 0 : vector<2x32xf32>, vector<2x32xf32>, vector<2x32xf32>, vector<2x32xf32>, vector<2x32xf32>, vector<2x32xf32>, vector<2x32xf32>, vector<2x32xf32> -> vector<16x32xf32>
    %c0_36 = arith.constant 0 : index
    %c0_37 = arith.constant 0 : index
    %100 = vector.load %arg9[%c0_36, %c0_37] : memref<32x16xf32, #tpu.memory_space<vmem>>, vector<32x16xf32>
    %cst_38 = arith.constant dense<0.000000e+00> : vector<16x16xf32>
    %101 = tpu.matmul %99, %100, %cst_38 {dimension_numbers = #tpu.dot_dimension_numbers<[1], [0], [0], [1], [0, 0, 1, 1], [], []>} : vector<16x32xf32>, vector<32x16xf32>, vector<16x16xf32> -> vector<16x16xf32>
    %c0_39 = arith.constant 0 : index
    %c0_40 = arith.constant 0 : index
    %102 = vector.load %arg10[%c0_39, %c0_40] : memref<1x16xf32, #tpu.memory_space<vmem>>, vector<1x16xf32>
    %103 = vector.broadcast %102 : vector<1x16xf32> to vector<16x16xf32>
    %104 = arith.addf %101, %103 : vector<16x16xf32>
    %c0_41 = arith.constant 0 : index
    %c0_42 = arith.constant 0 : index
    %105 = vector.load %arg11[%c0_41, %c0_42] : memref<16x16xf32, #tpu.memory_space<vmem>>, vector<16x16xf32>
    tpu.vector_store %arg11[%c0_41, %c0_42], %104 {strides = array<i32>} : memref<16x16xf32, #tpu.memory_space<vmem>>, vector<16x16xf32>,
    return
  }
}

</mosaic_0001>

<llo_original>
// kernel: tpu_custom_call.1
$region0: #{tpu_custom_call.1}
  #allocation0 [shape = 'u32[]', space=smem, size = 0x4, offset = 0x4, fixed_abs, tag = 'smem constant byte address 0x4 - core index']
  #allocation1 [shape = 'u32[144,128]{1,0:T(1,128)}', space=vmem, size = 0x12000, scoped, tag = 'internal scratch']
  %s0 = inlined_call_operand.hbm [shape: f32[2,8,16], index: 0, kind: input, shape index: {}]
  %s1 = inlined_call_operand.hbm [shape: f32[2,8,16], index: 1, kind: input, shape index: {}]
  %s2 = inlined_call_operand.vmem [shape: f32[2,32], index: 2, kind: input, shape index: {}]
  %s3 = inlined_call_operand.hbm [shape: f32[16,32], index: 3, kind: input, shape index: {}]
  %s4 = inlined_call_operand.vmem [shape: f32[32,32], index: 4, kind: input, shape index: {}]
  %s5 = inlined_call_operand.hbm [shape: f32[1,32], index: 5, kind: input, shape index: {}]
  %s6 = inlined_call_operand.hbm [shape: f32[16,32], index: 6, kind: input, shape index: {}]
  %s7 = inlined_call_operand.vmem [shape: f32[32,32], index: 7, kind: input, shape index: {}]
  %s8 = inlined_call_operand.hbm [shape: f32[1,32], index: 8, kind: input, shape index: {}]
  %s9 = inlined_call_operand.vmem [shape: f32[32,16], index: 9, kind: input, shape index: {}]
  %s10 = inlined_call_operand.vmem [shape: f32[1,16], index: 10, kind: input, shape index: {}]
  %s11 = inlined_call_operand.hbm [shape: f32[16,16], index: 11, kind: output, shape index: {}]
  %s12 = sld [smem:[#allocation0]]
  $region78: #{tpu_custom_call.1} parent=0
    _
  %s14 = ssub.s32 1, %s12
  %s15 = scalar_select 0, %s14, %s12
  $region1: #{tpu_custom_call.1} parent=0
    #allocation2 [shape = 'u8[8192]{0}', space=vmem, size = 0x2000, scoped, tag = 'input window, operand 0, single buffered']
    #allocation3 [shape = 's32[1]{0}', space=sflag, size = 0x4, scoped, tag = 'scoped memory for tpu_custom_call.1']
    #allocation4 [shape = 's32[1]{0}', space=sflag, size = 0x4, scoped, tag = 'scoped memory for tpu_custom_call.1']
    #allocation5 [shape = 'u8[8192]{0}', space=vmem, size = 0x2000, scoped, tag = 'input window, operand 1, single buffered']
    #allocation6 [shape = 's32[1]{0}', space=sflag, size = 0x4, scoped, tag = 'scoped memory for tpu_custom_call.1']
    #allocation7 [shape = 'u8[8192]{0}', space=vmem, size = 0x2000, scoped, tag = 'input window, operand 3, single buffered']
    #allocation8 [shape = 'u8[512]{0}', space=vmem, size = 0x400, scoped, tag = 'input window, operand 5, single buffered']
    #allocation9 [shape = 's32[1]{0}', space=sflag, size = 0x4, scoped, tag = 'scoped memory for tpu_custom_call.1']
    #allocation10 [shape = 'u8[8192]{0}', space=vmem, size = 0x2000, scoped, tag = 'input window, operand 6, single buffered']
    #allocation11 [shape = 'u8[512]{0}', space=vmem, size = 0x400, scoped, tag = 'input window, operand 8, single buffered']
    #allocation12 [shape = 's32[1]{0}', space=sflag, size = 0x4, scoped, tag = 'scoped memory for tpu_custom_call.1']
    #allocation13 [shape = 'u8[8192]{0}', space=vmem, size = 0x2000, scoped, tag = 'output window, operand 0, single buffered']
    %16 = vsyncpa [#allocation3], 0
    %17 = vsyncpa [#allocation6], 0
    %18 = vsyncpa [#allocation9], 0
    %19 = vsyncpa [#allocation12], 0
    %20 = vsyncpa [#allocation4], 0
    // Predicated region
    $region2: #{tpu_custom_call.1} parent=1 // pred_check
      _
    $region3: #{tpu_custom_call.1} parent=1 // pred_check_branch
      %22 = sbr.rel (0) target = $region5
    $region4: #{tpu_custom_call.1} parent=1 // pred_region
      %s24 = ssub.s32 256, 256
      %25 = vsyncadd [#allocation3], %s24
      %s26 = sshll.u32 [#allocation2], 4
      %s27 = int_to_ptr.vmem [resolvable:$true] %s26
      %32 = dma.hbm_to_vmem [thread:$0]  %s0, 256, %s27, [#allocation3], 128, 128, 8
    $region5: #{tpu_custom_call.1} parent=1 // pred_fallthru
      _
    // Predicated region
    $region6: #{tpu_custom_call.1} parent=1 // pred_check
      _
    $region7: #{tpu_custom_call.1} parent=1 // pred_check_branch
      %34 = sbr.rel (0) target = $region9
    $region8: #{tpu_custom_call.1} parent=1 // pred_region
      %s36 = ssub.s32 256, 256
      %37 = vsyncadd [#allocation6], %s36
      %s38 = sshll.u32 [#allocation5], 4
      %s39 = int_to_ptr.vmem [resolvable:$true] %s38
      %44 = dma.hbm_to_vmem [thread:$0]  %s1, 256, %s39, [#allocation6], 128, 128, 8
    $region9: #{tpu_custom_call.1} parent=1 // pred_fallthru
      _
    // Predicated region
    $region10: #{tpu_custom_call.1} parent=1 // pred_check
      _
    $region11: #{tpu_custom_call.1} parent=1 // pred_check_branch
      %46 = sbr.rel (0) target = $region13
    $region12: #{tpu_custom_call.1} parent=1 // pred_region
      _
    $region13: #{tpu_custom_call.1} parent=1 // pred_fallthru
      _
    // Predicated region
    $region14: #{tpu_custom_call.1} parent=1 // pred_check
      _
    $region15: #{tpu_custom_call.1} parent=1 // pred_check_branch
      %48 = sbr.rel (0) target = $region17
    $region16: #{tpu_custom_call.1} parent=1 // pred_region
      %s50 = ssub.s32 256, 256
      %51 = vsyncadd [#allocation6], %s50
      %s52 = sshll.u32 [#allocation7], 4
      %s53 = int_to_ptr.vmem [resolvable:$true] %s52
      %58 = dma.hbm_to_vmem [thread:$0]  %s3, 256, %s53, [#allocation6], 128, 128, 8
    $region17: #{tpu_custom_call.1} parent=1 // pred_fallthru
      _
    // Predicated region
    $region18: #{tpu_custom_call.1} parent=1 // pred_check
      _
    $region19: #{tpu_custom_call.1} parent=1 // pred_check_branch
      %60 = sbr.rel (0) target = $region21
    $region20: #{tpu_custom_call.1} parent=1 // pred_region
      _
    $region21: #{tpu_custom_call.1} parent=1 // pred_fallthru
      _
    // Predicated region
    $region22: #{tpu_custom_call.1} parent=1 // pred_check
      _
    $region23: #{tpu_custom_call.1} parent=1 // pred_check_branch
      %62 = sbr.rel (0) target = $region25
    $region24: #{tpu_custom_call.1} parent=1 // pred_region
      %s64 = ssub.s32 16, 16
      %65 = vsyncadd [#allocation9], %s64
      %s67 = sshll.u32 [#allocation8], 4
      %s68 = int_to_ptr.vmem [resolvable:$true] %s67
      %70 = dma.hbm_to_vmem [thread:$0]  %s5, 16, %s68, [#allocation9]
    $region25: #{tpu_custom_call.1} parent=1 // pred_fallthru
      _
    // Predicated region
    $region26: #{tpu_custom_call.1} parent=1 // pred_check
      _
    $region27: #{tpu_custom_call.1} parent=1 // pred_check_branch
      %72 = sbr.rel (0) target = $region29
    $region28: #{tpu_custom_call.1} parent=1 // pred_region
      %s74 = ssub.s32 256, 256
      %75 = vsyncadd [#allocation9], %s74
      %s76 = sshll.u32 [#allocation10], 4
      %s77 = int_to_ptr.vmem [resolvable:$true] %s76
      %82 = dma.hbm_to_vmem [thread:$0]  %s6, 256, %s77, [#allocation9], 128, 128, 8
    $region29: #{tpu_custom_call.1} parent=1 // pred_fallthru
      _
    // Predicated region
    $region30: #{tpu_custom_call.1} parent=1 // pred_check
      _
    $region31: #{tpu_custom_call.1} parent=1 // pred_check_branch
      %84 = sbr.rel (0) target = $region33
    $region32: #{tpu_custom_call.1} parent=1 // pred_region
      _
    $region33: #{tpu_custom_call.1} parent=1 // pred_fallthru
      _
    // Predicated region
    $region34: #{tpu_custom_call.1} parent=1 // pred_check
      _
    $region35: #{tpu_custom_call.1} parent=1 // pred_check_branch
      %86 = sbr.rel (0) target = $region37
    $region36: #{tpu_custom_call.1} parent=1 // pred_region
      %s88 = ssub.s32 16, 16
      %89 = vsyncadd [#allocation12], %s88
      %s91 = sshll.u32 [#allocation11], 4
      %s92 = int_to_ptr.vmem [resolvable:$true] %s91
      %94 = dma.hbm_to_vmem [thread:$0]  %s8, 16, %s92, [#allocation12]
    $region37: #{tpu_custom_call.1} parent=1 // pred_fallthru
      _
    // Predicated region
    $region38: #{tpu_custom_call.1} parent=1 // pred_check
      _
    $region39: #{tpu_custom_call.1} parent=1 // pred_check_branch
      %96 = sbr.rel (0) target = $region41
    $region40: #{tpu_custom_call.1} parent=1 // pred_region
      _
    $region41: #{tpu_custom_call.1} parent=1 // pred_fallthru
      _
    // Predicated region
    $region42: #{tpu_custom_call.1} parent=1 // pred_check
      _
    $region43: #{tpu_custom_call.1} parent=1 // pred_check_branch
      %98 = sbr.rel (0) target = $region45
    $region44: #{tpu_custom_call.1} parent=1 // pred_region
      _
    $region45: #{tpu_custom_call.1} parent=1 // pred_fallthru
      _
    // Predicated region
    $region46: #{tpu_custom_call.1} parent=1 // pred_check
      _
    $region47: #{tpu_custom_call.1} parent=1 // pred_check_branch
      %100 = sbr.rel (0) target = $region49
    $region48: #{tpu_custom_call.1} parent=1 // pred_region
      %101 = dma.done [#allocation3], 256
    $region49: #{tpu_custom_call.1} parent=1 // pred_fallthru
      _
    // Predicated region
    $region50: #{tpu_custom_call.1} parent=1 // pred_check
      _
    $region51: #{tpu_custom_call.1} parent=1 // pred_check_branch
      %103 = sbr.rel (0) target = $region53
    $region52: #{tpu_custom_call.1} parent=1 // pred_region
      %104 = dma.done [#allocation6], 256
    $region53: #{tpu_custom_call.1} parent=1 // pred_fallthru
      _
    // Predicated region
    $region54: #{tpu_custom_call.1} parent=1 // pred_check
      _
    $region55: #{tpu_custom_call.1} parent=1 // pred_check_branch
      %106 = sbr.rel (0) target = $region57
    $region56: #{tpu_custom_call.1} parent=1 // pred_region
      %107 = dma.done [#allocation6], 256
    $region57: #{tpu_custom_call.1} parent=1 // pred_fallthru
      _
    // Predicated region
    $region58: #{tpu_custom_call.1} parent=1 // pred_check
      _
    $region59: #{tpu_custom_call.1} parent=1 // pred_check_branch
      %109 = sbr.rel (0) target = $region61
    $region60: #{tpu_custom_call.1} parent=1 // pred_region
      %110 = dma.done [#allocation9], 16
    $region61: #{tpu_custom_call.1} parent=1 // pred_fallthru
      _
    // Predicated region
    $region62: #{tpu_custom_call.1} parent=1 // pred_check
      _
    $region63: #{tpu_custom_call.1} parent=1 // pred_check_branch
      %112 = sbr.rel (0) target = $region65
    $region64: #{tpu_custom_call.1} parent=1 // pred_region
      %113 = dma.done [#allocation9], 256
    $region65: #{tpu_custom_call.1} parent=1 // pred_fallthru
      _
    // Predicated region
    $region66: #{tpu_custom_call.1} parent=1 // pred_check
      _
    $region67: #{tpu_custom_call.1} parent=1 // pred_check_branch
      %115 = sbr.rel (0) target = $region69
    $region68: #{tpu_custom_call.1} parent=1 // pred_region
      %116 = dma.done [#allocation12], 16
    $region69: #{tpu_custom_call.1} parent=1 // pred_fallthru
      _
    %v117 = vld [vmem:[#allocation2] sm:$0xff]
    %v118 = vld [vmem:[#allocation2 + $0x8] sm:$0xff]
    %v119 = vld [vmem:[#allocation7] sm:$0xff]
    %v120 = vld [vmem:[#allocation7 + $0x8] sm:$0xff]
    %v121 = vld [vmem:[#allocation8] sm:$0x1]
    %v123 = vlaneseq
    %v124 = vshrl.u32 %v123, 7
    %v125 = vsub.s32 0, %v124
    %v126 = vrot.slane %v121, %v125
    %vm128 = vcmask 130048
    %v130 = vsel %vm128, %v117, 0
    %v133 = vsel %vm128, %v118, 0
    %135 = vmatprep.subr.mxu0 0.0
    %136 = vmatpush1.msra.mxu0 %v119
    %137 = vmatprep.subr.mxu0 0.0
    %138 = vmatpush1.msra.mxu0 %v120
    %139 = vmatprep.subr.mxu0 0.0
    %140 = vmatpush1.msra.mxu0 0.0
    %141 = vmatprep.subr.mxu0 0.0
    %142 = vmatpush1.msra.mxu0 0.0
    %143 = vmatprep.subr.mxu0 0.0
    %144 = vmatpush1.msra.mxu0 0.0
    %145 = vmatprep.subr.mxu0 0.0
    %146 = vmatpush1.msra.mxu0 0.0
    %147 = vmatprep.subr.mxu0 0.0
    %148 = vmatpush1.msra.mxu0 0.0
    %149 = vmatprep.subr.mxu0 0.0
    %150 = vmatpush1.msra.mxu0 0.0
    %151 = vmatprep.subr.mxu0 0.0
    %152 = vmatpush1.msra.mxu0 0.0
    %153 = vmatprep.subr.mxu0 0.0
    %154 = vmatpush1.msra.mxu0 0.0
    %155 = vmatprep.subr.mxu0 0.0
    %156 = vmatpush1.msra.mxu0 0.0
    %157 = vmatprep.subr.mxu0 0.0
    %158 = vmatpush1.msra.mxu0 0.0
    %159 = vmatprep.subr.mxu0 0.0
    %160 = vmatpush1.msra.mxu0 0.0
    %161 = vmatprep.subr.mxu0 0.0
    %162 = vmatpush1.msra.mxu0 0.0
    %163 = vmatprep.subr.mxu0 0.0
    %164 = vmatpush1.msra.mxu0 0.0
    %165 = vmatprep.subr.mxu0 0.0
    %166 = vmatpush1.msra.mxu0 0.0
    %167 = vmatprep.subr.mxu0 0.0
    %168 = vmatpush1.msra.mxu0 0.0
    %169 = vmatprep.subr.mxu0 0.0
    %170 = vmatpush1.msra.mxu0 0.0
    %171 = vmatprep.subr.mxu0 0.0
    %172 = vmatpush1.msra.mxu0 0.0
    %173 = vmatprep.subr.mxu0 0.0
    %174 = vmatpush1.msra.mxu0 0.0
    %175 = vmatprep.subr.mxu0 0.0
    %176 = vmatpush1.msra.mxu0 0.0
    %177 = vmatprep.subr.mxu0 0.0
    %178 = vmatpush1.msra.mxu0 0.0
    %179 = vmatprep.subr.mxu0 0.0
    %180 = vmatpush1.msra.mxu0 0.0
    %181 = vmatprep.subr.mxu0 0.0
    %182 = vmatpush1.msra.mxu0 0.0
    %183 = vmatprep.subr.mxu0 0.0
    %184 = vmatpush1.msra.mxu0 0.0
    %185 = vmatprep.subr.mxu0 0.0
    %186 = vmatpush1.msra.mxu0 0.0
    %187 = vmatprep.subr.mxu0 0.0
    %188 = vmatpush1.msra.mxu0 0.0
    %189 = vmatprep.subr.mxu0 0.0
    %190 = vmatpush1.msra.mxu0 0.0
    %191 = vmatprep.subr.mxu0 0.0
    %192 = vmatpush1.msra.mxu0 0.0
    %193 = vmatprep.subr.mxu0 0.0
    %194 = vmatpush1.msra.mxu0 0.0
    %195 = vmatprep.subr.mxu0 0.0
    %196 = vmatpush1.msra.mxu0 0.0
    %197 = vmatprep.subr.mxu0 0.0
    %198 = vmatpush1.msra.mxu0 0.0
    %199 = vmatprep.mubr.f32.mxu0 0.0
    %200 = vmatmul.mubr.f32.gmra.mrb[0].mxu0 %v130
    %v201 = vpop.f32.mrb[0].mxu0
    %v202 = vadd.f32 %v126, %v201
    %v203 = vpop.f32.mrb[0].mxu0
    %204 = vmatprep.mubr.f32.mxu0 0.0
    %205 = vmatmul.mubr.f32.gmra.mrb[0].mxu0 %v133
    %v206 = vpop.f32.mrb[0].mxu0
    %v207 = vadd.f32 %v126, %v206
    %v208 = vpop.f32.mrb[0].mxu0
    %209 = vdwg.mxu0
    %v210 = vld [vmem:[#allocation5] sm:$0xff]
    %v211 = vld [vmem:[#allocation5 + $0x8] sm:$0xff]
    %v212 = vld [vmem:[#allocation10] sm:$0xff]
    %v213 = vld [vmem:[#allocation10 + $0x8] sm:$0xff]
    %v214 = vld [vmem:[#allocation11] sm:$0x1]
    %v216 = vlaneseq
    %v217 = vshrl.u32 %v216, 7
    %v218 = vsub.s32 0, %v217
    %v219 = vrot.slane %v214, %v218
    %v222 = vsel %vm128, %v210, 0
    %v225 = vsel %vm128, %v211, 0
    %227 = vmatprep.subr.mxu0 0.0
    %228 = vmatpush1.msra.mxu0 %v212
    %229 = vmatprep.subr.mxu0 0.0
    %230 = vmatpush1.msra.mxu0 %v213
    %231 = vmatprep.subr.mxu0 0.0
    %232 = vmatpush1.msra.mxu0 0.0
    %233 = vmatprep.subr.mxu0 0.0
    %234 = vmatpush1.msra.mxu0 0.0
    %235 = vmatprep.subr.mxu0 0.0
    %236 = vmatpush1.msra.mxu0 0.0
    %237 = vmatprep.subr.mxu0 0.0
    %238 = vmatpush1.msra.mxu0 0.0
    %239 = vmatprep.subr.mxu0 0.0
    %240 = vmatpush1.msra.mxu0 0.0
    %241 = vmatprep.subr.mxu0 0.0
    %242 = vmatpush1.msra.mxu0 0.0
    %243 = vmatprep.subr.mxu0 0.0
    %244 = vmatpush1.msra.mxu0 0.0
    %245 = vmatprep.subr.mxu0 0.0
    %246 = vmatpush1.msra.mxu0 0.0
    %247 = vmatprep.subr.mxu0 0.0
    %248 = vmatpush1.msra.mxu0 0.0
    %249 = vmatprep.subr.mxu0 0.0
    %250 = vmatpush1.msra.mxu0 0.0
    %251 = vmatprep.subr.mxu0 0.0
    %252 = vmatpush1.msra.mxu0 0.0
    %253 = vmatprep.subr.mxu0 0.0
    %254 = vmatpush1.msra.mxu0 0.0
    %255 = vmatprep.subr.mxu0 0.0
    %256 = vmatpush1.msra.mxu0 0.0
    %257 = vmatprep.subr.mxu0 0.0
    %258 = vmatpush1.msra.mxu0 0.0
    %259 = vmatprep.subr.mxu0 0.0
    %260 = vmatpush1.msra.mxu0 0.0
    %261 = vmatprep.subr.mxu0 0.0
    %262 = vmatpush1.msra.mxu0 0.0
    %263 = vmatprep.subr.mxu0 0.0
    %264 = vmatpush1.msra.mxu0 0.0
    %265 = vmatprep.subr.mxu0 0.0
    %266 = vmatpush1.msra.mxu0 0.0
    %267 = vmatprep.subr.mxu0 0.0
    %268 = vmatpush1.msra.mxu0 0.0
    %269 = vmatprep.subr.mxu0 0.0
    %270 = vmatpush1.msra.mxu0 0.0
    %271 = vmatprep.subr.mxu0 0.0
    %272 = vmatpush1.msra.mxu0 0.0
    %273 = vmatprep.subr.mxu0 0.0
    %274 = vmatpush1.msra.mxu0 0.0
    %275 = vmatprep.subr.mxu0 0.0
    %276 = vmatpush1.msra.mxu0 0.0
    %277 = vmatprep.subr.mxu0 0.0
    %278 = vmatpush1.msra.mxu0 0.0
    %279 = vmatprep.subr.mxu0 0.0
    %280 = vmatpush1.msra.mxu0 0.0
    %281 = vmatprep.subr.mxu0 0.0
    %282 = vmatpush1.msra.mxu0 0.0
    %283 = vmatprep.subr.mxu0 0.0
    %284 = vmatpush1.msra.mxu0 0.0
    %285 = vmatprep.subr.mxu0 0.0
    %286 = vmatpush1.msra.mxu0 0.0
    %287 = vmatprep.subr.mxu0 0.0
    %288 = vmatpush1.msra.mxu0 0.0
    %289 = vmatprep.subr.mxu0 0.0
    %290 = vmatpush1.msra.mxu0 0.0
    %291 = vmatprep.mubr.f32.mxu0 0.0
    %292 = vmatmul.mubr.f32.gmra.mrb[0].mxu0 %v222
    %v293 = vpop.f32.mrb[0].mxu0
    %v294 = vadd.f32 %v219, %v293
    %v295 = vpop.f32.mrb[0].mxu0
    %296 = vmatprep.mubr.f32.mxu0 0.0
    %297 = vmatmul.mubr.f32.gmra.mrb[0].mxu0 %v225
    %v298 = vpop.f32.mrb[0].mxu0
    %v299 = vadd.f32 %v219, %v298
    %v300 = vpop.f32.mrb[0].mxu0
    %301 = vdwg.mxu0
    %v302 = vld [vmem:[%s4] sm:$0xff]
    %v303 = vld [vmem:[%s4 + $0x8] sm:$0xff]
    %v304 = vld [vmem:[%s4 + $0x10] sm:$0xff]
    %v305 = vld [vmem:[%s4 + $0x18] sm:$0xff]
    %v306 = vld [vmem:[%s7] sm:$0xff]
    %v307 = vld [vmem:[%s7 + $0x8] sm:$0xff]
    %v308 = vld [vmem:[%s7 + $0x10] sm:$0xff]
    %v309 = vld [vmem:[%s7 + $0x18] sm:$0xff]
    %v310 = vld [vmem:[%s2] sm:$0x3]
    %vm311 = vcmask 261120
    %v313 = vsel %vm311, %v310, 0
    %315 = vmatprep.subr.mxu0 0.0
    %316 = vmatpush1.msra.mxu0 %v302
    %317 = vmatprep.subr.mxu0 0.0
    %318 = vmatpush1.msra.mxu0 %v303
    %319 = vmatprep.subr.mxu0 0.0
    %320 = vmatpush1.msra.mxu0 %v304
    %321 = vmatprep.subr.mxu0 0.0
    %322 = vmatpush1.msra.mxu0 %v305
    %323 = vmatprep.subr.mxu0 0.0
    %324 = vmatpush1.msra.mxu0 0.0
    %325 = vmatprep.subr.mxu0 0.0
    %326 = vmatpush1.msra.mxu0 0.0
    %327 = vmatprep.subr.mxu0 0.0
    %328 = vmatpush1.msra.mxu0 0.0
    %329 = vmatprep.subr.mxu0 0.0
    %330 = vmatpush1.msra.mxu0 0.0
    %331 = vmatprep.subr.mxu0 0.0
    %332 = vmatpush1.msra.mxu0 0.0
    %333 = vmatprep.subr.mxu0 0.0
    %334 = vmatpush1.msra.mxu0 0.0
    %335 = vmatprep.subr.mxu0 0.0
    %336 = vmatpush1.msra.mxu0 0.0
    %337 = vmatprep.subr.mxu0 0.0
    %338 = vmatpush1.msra.mxu0 0.0
    %339 = vmatprep.subr.mxu0 0.0
    %340 = vmatpush1.msra.mxu0 0.0
    %341 = vmatprep.subr.mxu0 0.0
    %342 = vmatpush1.msra.mxu0 0.0
    %343 = vmatprep.subr.mxu0 0.0
    %344 = vmatpush1.msra.mxu0 0.0
    %345 = vmatprep.subr.mxu0 0.0
    %346 = vmatpush1.msra.mxu0 0.0
    %347 = vmatprep.subr.mxu0 0.0
    %348 = vmatpush1.msra.mxu0 0.0
    %349 = vmatprep.subr.mxu0 0.0
    %350 = vmatpush1.msra.mxu0 0.0
    %351 = vmatprep.subr.mxu0 0.0
    %352 = vmatpush1.msra.mxu0 0.0
    %353 = vmatprep.subr.mxu0 0.0
    %354 = vmatpush1.msra.mxu0 0.0
    %355 = vmatprep.subr.mxu0 0.0
    %356 = vmatpush1.msra.mxu0 0.0
    %357 = vmatprep.subr.mxu0 0.0
    %358 = vmatpush1.msra.mxu0 0.0
    %359 = vmatprep.subr.mxu0 0.0
    %360 = vmatpush1.msra.mxu0 0.0
    %361 = vmatprep.subr.mxu0 0.0
    %362 = vmatpush1.msra.mxu0 0.0
    %363 = vmatprep.subr.mxu0 0.0
    %364 = vmatpush1.msra.mxu0 0.0
    %365 = vmatprep.subr.mxu0 0.0
    %366 = vmatpush1.msra.mxu0 0.0
    %367 = vmatprep.subr.mxu0 0.0
    %368 = vmatpush1.msra.mxu0 0.0
    %369 = vmatprep.subr.mxu0 0.0
    %370 = vmatpush1.msra.mxu0 0.0
    %371 = vmatprep.subr.mxu0 0.0
    %372 = vmatpush1.msra.mxu0 0.0
    %373 = vmatprep.subr.mxu0 0.0
    %374 = vmatpush1.msra.mxu0 0.0
    %375 = vmatprep.subr.mxu0 0.0
    %376 = vmatpush1.msra.mxu0 0.0
    %377 = vmatprep.subr.mxu0 0.0
    %378 = vmatpush1.msra.mxu0 0.0
    %379 = vmatprep.mubr.f32.mxu0 0.0
    %380 = vmatmul.mubr.f32.gmra.mrb[0].mxu0 %v313
    %v381 = vpop.f32.mrb[0].mxu0
    %v382 = vadd.f32 0.0, %v381
    %v383 = vpop.f32.mrb[0].mxu0
    %384 = vdwg.mxu0
    %v386 = vrot.slane %v382, 1
    %v389 = vadd.f32 %v202, %v382
    %v390 = vadd.f32 %v207, %v386
    %v391 = vtanh.pop %v389
    %v392 = vtanh.pop %v390
    %v395 = vrot.slane %v392, 7
    %vm396 = vcmask 1041409
    %v397 = vsel %vm396, %v395, %v391
    %v398 = vsel %vm311, %v397, 0
    %400 = vmatprep.subr.mxu0 0.0
    %401 = vmatpush1.msra.mxu0 %v302
    %402 = vmatprep.subr.mxu0 0.0
    %403 = vmatpush1.msra.mxu0 %v303
    %404 = vmatprep.subr.mxu0 0.0
    %405 = vmatpush1.msra.mxu0 %v304
    %406 = vmatprep.subr.mxu0 0.0
    %407 = vmatpush1.msra.mxu0 %v305
    %408 = vmatprep.subr.mxu0 0.0
    %409 = vmatpush1.msra.mxu0 0.0
    %410 = vmatprep.subr.mxu0 0.0
    %411 = vmatpush1.msra.mxu0 0.0
    %412 = vmatprep.subr.mxu0 0.0
    %413 = vmatpush1.msra.mxu0 0.0
    %414 = vmatprep.subr.mxu0 0.0
    %415 = vmatpush1.msra.mxu0 0.0
    %416 = vmatprep.subr.mxu0 0.0
    %417 = vmatpush1.msra.mxu0 0.0
    %418 = vmatprep.subr.mxu0 0.0
    %419 = vmatpush1.msra.mxu0 0.0
    %420 = vmatprep.subr.mxu0 0.0
    %421 = vmatpush1.msra.mxu0 0.0
    %422 = vmatprep.subr.mxu0 0.0
    %423 = vmatpush1.msra.mxu0 0.0
    %424 = vmatprep.subr.mxu0 0.0
    %425 = vmatpush1.msra.mxu0 0.0
    %426 = vmatprep.subr.mxu0 0.0
    %427 = vmatpush1.msra.mxu0 0.0
    %428 = vmatprep.subr.mxu0 0.0
    %429 = vmatpush1.msra.mxu0 0.0
    %430 = vmatprep.subr.mxu0 0.0
    %431 = vmatpush1.msra.mxu0 0.0
    %432 = vmatprep.subr.mxu0 0.0
    %433 = vmatpush1.msra.mxu0 0.0
    %434 = vmatprep.subr.mxu0 0.0
    %435 = vmatpush1.msra.mxu0 0.0
    %436 = vmatprep.subr.mxu0 0.0
    %437 = vmatpush1.msra.mxu0 0.0
    %438 = vmatprep.subr.mxu0 0.0
    %439 = vmatpush1.msra.mxu0 0.0
    %440 = vmatprep.subr.mxu0 0.0
    %441 = vmatpush1.msra.mxu0 0.0
    %442 = vmatprep.subr.mxu0 0.0
    %443 = vmatpush1.msra.mxu0 0.0
    %444 = vmatprep.subr.mxu0 0.0
    %445 = vmatpush1.msra.mxu0 0.0
    %446 = vmatprep.subr.mxu0 0.0
    %447 = vmatpush1.msra.mxu0 0.0
    %448 = vmatprep.subr.mxu0 0.0
    %449 = vmatpush1.msra.mxu0 0.0
    %450 = vmatprep.subr.mxu0 0.0
    %451 = vmatpush1.msra.mxu0 0.0
    %452 = vmatprep.subr.mxu0 0.0
    %453 = vmatpush1.msra.mxu0 0.0
    %454 = vmatprep.subr.mxu0 0.0
    %455 = vmatpush1.msra.mxu0 0.0
    %456 = vmatprep.subr.mxu0 0.0
    %457 = vmatpush1.msra.mxu0 0.0
    %458 = vmatprep.subr.mxu0 0.0
    %459 = vmatpush1.msra.mxu0 0.0
    %460 = vmatprep.subr.mxu0 0.0
    %461 = vmatpush1.msra.mxu0 0.0
    %462 = vmatprep.subr.mxu0 0.0
    %463 = vmatpush1.msra.mxu0 0.0
    %464 = vmatprep.mubr.f32.mxu0 0.0
    %465 = vmatmul.mubr.f32.gmra.mrb[0].mxu0 %v398
    %v466 = vpop.f32.mrb[0].mxu0
    %v467 = vadd.f32 0.0, %v466
    %v468 = vpop.f32.mrb[0].mxu0
    %469 = vdwg.mxu0
    %v471 = vrot.slane %v467, 7
    %v474 = vadd.f32 %v202, %v471
    %v475 = vadd.f32 %v207, %v467
    %v476 = vtanh.pop %v474
    %v477 = vtanh.pop %v475
    %v480 = vrot.slane %v476, 1
    %v481 = vsel %vm396, %v477, %v480
    %v482 = vsel %vm311, %v481, 0
    %484 = vmatprep.subr.mxu0 0.0
    %485 = vmatpush1.msra.mxu0 %v302
    %486 = vmatprep.subr.mxu0 0.0
    %487 = vmatpush1.msra.mxu0 %v303
    %488 = vmatprep.subr.mxu0 0.0
    %489 = vmatpush1.msra.mxu0 %v304
    %490 = vmatprep.subr.mxu0 0.0
    %491 = vmatpush1.msra.mxu0 %v305
    %492 = vmatprep.subr.mxu0 0.0
    %493 = vmatpush1.msra.mxu0 0.0
    %494 = vmatprep.subr.mxu0 0.0
    %495 = vmatpush1.msra.mxu0 0.0
    %496 = vmatprep.subr.mxu0 0.0
    %497 = vmatpush1.msra.mxu0 0.0
    %498 = vmatprep.subr.mxu0 0.0
    %499 = vmatpush1.msra.mxu0 0.0
    %500 = vmatprep.subr.mxu0 0.0
    %501 = vmatpush1.msra.mxu0 0.0
    %502 = vmatprep.subr.mxu0 0.0
    %503 = vmatpush1.msra.mxu0 0.0
    %504 = vmatprep.subr.mxu0 0.0
    %505 = vmatpush1.msra.mxu0 0.0
    %506 = vmatprep.subr.mxu0 0.0
    %507 = vmatpush1.msra.mxu0 0.0
    %508 = vmatprep.subr.mxu0 0.0
    %509 = vmatpush1.msra.mxu0 0.0
    %510 = vmatprep.subr.mxu0 0.0
    %511 = vmatpush1.msra.mxu0 0.0
    %512 = vmatprep.subr.mxu0 0.0
    %513 = vmatpush1.msra.mxu0 0.0
    %514 = vmatprep.subr.mxu0 0.0
    %515 = vmatpush1.msra.mxu0 0.0
    %516 = vmatprep.subr.mxu0 0.0
    %517 = vmatpush1.msra.mxu0 0.0
    %518 = vmatprep.subr.mxu0 0.0
    %519 = vmatpush1.msra.mxu0 0.0
    %520 = vmatprep.subr.mxu0 0.0
    %521 = vmatpush1.msra.mxu0 0.0
    %522 = vmatprep.subr.mxu0 0.0
    %523 = vmatpush1.msra.mxu0 0.0
    %524 = vmatprep.subr.mxu0 0.0
    %525 = vmatpush1.msra.mxu0 0.0
    %526 = vmatprep.subr.mxu0 0.0
    %527 = vmatpush1.msra.mxu0 0.0
    %528 = vmatprep.subr.mxu0 0.0
    %529 = vmatpush1.msra.mxu0 0.0
    %530 = vmatprep.subr.mxu0 0.0
    %531 = vmatpush1.msra.mxu0 0.0
    %532 = vmatprep.subr.mxu0 0.0
    %533 = vmatpush1.msra.mxu0 0.0
    %534 = vmatprep.subr.mxu0 0.0
    %535 = vmatpush1.msra.mxu0 0.0
    %536 = vmatprep.subr.mxu0 0.0
    %537 = vmatpush1.msra.mxu0 0.0
    %538 = vmatprep.subr.mxu0 0.0
    %539 = vmatpush1.msra.mxu0 0.0
    %540 = vmatprep.subr.mxu0 0.0
    %541 = vmatpush1.msra.mxu0 0.0
    %542 = vmatprep.subr.mxu0 0.0
    %543 = vmatpush1.msra.mxu0 0.0
    %544 = vmatprep.subr.mxu0 0.0
    %545 = vmatpush1.msra.mxu0 0.0
    %546 = vmatprep.subr.mxu0 0.0
    %547 = vmatpush1.msra.mxu0 0.0
    %548 = vmatprep.mubr.f32.mxu0 0.0
    %549 = vmatmul.mubr.f32.gmra.mrb[0].mxu0 %v482
    %v550 = vpop.f32.mrb[0].mxu0
    %v551 = vadd.f32 0.0, %v550
    %v552 = vpop.f32.mrb[0].mxu0
    %553 = vdwg.mxu0
    %v555 = vrot.slane %v551, 6
    %v556 = vrot.slane %v551, 7
    %v559 = vadd.f32 %v202, %v555
    %v560 = vadd.f32 %v207, %v556
    %v561 = vtanh.pop %v559
    %v562 = vtanh.pop %v560
    %v565 = vrot.slane %v561, 2
    %v566 = vrot.slane %v562, 1
    %v567 = vsel %vm396, %v566, %v565
    %v568 = vsel %vm311, %v567, 0
    %570 = vmatprep.subr.mxu0 0.0
    %571 = vmatpush1.msra.mxu0 %v302
    %572 = vmatprep.subr.mxu0 0.0
    %573 = vmatpush1.msra.mxu0 %v303
    %574 = vmatprep.subr.mxu0 0.0
    %575 = vmatpush1.msra.mxu0 %v304
    %576 = vmatprep.subr.mxu0 0.0
    %577 = vmatpush1.msra.mxu0 %v305
    %578 = vmatprep.subr.mxu0 0.0
    %579 = vmatpush1.msra.mxu0 0.0
    %580 = vmatprep.subr.mxu0 0.0
    %581 = vmatpush1.msra.mxu0 0.0
    %582 = vmatprep.subr.mxu0 0.0
    %583 = vmatpush1.msra.mxu0 0.0
    %584 = vmatprep.subr.mxu0 0.0
    %585 = vmatpush1.msra.mxu0 0.0
    %586 = vmatprep.subr.mxu0 0.0
    %587 = vmatpush1.msra.mxu0 0.0
    %588 = vmatprep.subr.mxu0 0.0
    %589 = vmatpush1.msra.mxu0 0.0
    %590 = vmatprep.subr.mxu0 0.0
    %591 = vmatpush1.msra.mxu0 0.0
    %592 = vmatprep.subr.mxu0 0.0
    %593 = vmatpush1.msra.mxu0 0.0
    %594 = vmatprep.subr.mxu0 0.0
    %595 = vmatpush1.msra.mxu0 0.0
    %596 = vmatprep.subr.mxu0 0.0
    %597 = vmatpush1.msra.mxu0 0.0
    %598 = vmatprep.subr.mxu0 0.0
    %599 = vmatpush1.msra.mxu0 0.0
    %600 = vmatprep.subr.mxu0 0.0
    %601 = vmatpush1.msra.mxu0 0.0
    %602 = vmatprep.subr.mxu0 0.0
    %603 = vmatpush1.msra.mxu0 0.0
    %604 = vmatprep.subr.mxu0 0.0
    %605 = vmatpush1.msra.mxu0 0.0
    %606 = vmatprep.subr.mxu0 0.0
    %607 = vmatpush1.msra.mxu0 0.0
    %608 = vmatprep.subr.mxu0 0.0
    %609 = vmatpush1.msra.mxu0 0.0
    %610 = vmatprep.subr.mxu0 0.0
    %611 = vmatpush1.msra.mxu0 0.0
    %612 = vmatprep.subr.mxu0 0.0
    %613 = vmatpush1.msra.mxu0 0.0
    %614 = vmatprep.subr.mxu0 0.0
    %615 = vmatpush1.msra.mxu0 0.0
    %616 = vmatprep.subr.mxu0 0.0
    %617 = vmatpush1.msra.mxu0 0.0
    %618 = vmatprep.subr.mxu0 0.0
    %619 = vmatpush1.msra.mxu0 0.0
    %620 = vmatprep.subr.mxu0 0.0
    %621 = vmatpush1.msra.mxu0 0.0
    %622 = vmatprep.subr.mxu0 0.0
    %623 = vmatpush1.msra.mxu0 0.0
    %624 = vmatprep.subr.mxu0 0.0
    %625 = vmatpush1.msra.mxu0 0.0
    %626 = vmatprep.subr.mxu0 0.0
    %627 = vmatpush1.msra.mxu0 0.0
    %628 = vmatprep.subr.mxu0 0.0
    %629 = vmatpush1.msra.mxu0 0.0
    %630 = vmatprep.subr.mxu0 0.0
    %631 = vmatpush1.msra.mxu0 0.0
    %632 = vmatprep.subr.mxu0 0.0
    %633 = vmatpush1.msra.mxu0 0.0
    %634 = vmatprep.mubr.f32.mxu0 0.0
    %635 = vmatmul.mubr.f32.gmra.mrb[0].mxu0 %v568
    %v636 = vpop.f32.mrb[0].mxu0
    %v637 = vadd.f32 0.0, %v636
    %v638 = vpop.f32.mrb[0].mxu0
    %639 = vdwg.mxu0
    %v641 = vrot.slane %v637, 5
    %v642 = vrot.slane %v637, 6
    %v645 = vadd.f32 %v202, %v641
    %v646 = vadd.f32 %v207, %v642
    %v647 = vtanh.pop %v645
    %v648 = vtanh.pop %v646
    %v651 = vrot.slane %v647, 3
    %v652 = vrot.slane %v648, 2
    %v653 = vsel %vm396, %v652, %v651
    %v654 = vsel %vm311, %v653, 0
    %656 = vmatprep.subr.mxu0 0.0
    %657 = vmatpush1.msra.mxu0 %v302
    %658 = vmatprep.subr.mxu0 0.0
    %659 = vmatpush1.msra.mxu0 %v303
    %660 = vmatprep.subr.mxu0 0.0
    %661 = vmatpush1.msra.mxu0 %v304
    %662 = vmatprep.subr.mxu0 0.0
    %663 = vmatpush1.msra.mxu0 %v305
    %664 = vmatprep.subr.mxu0 0.0
    %665 = vmatpush1.msra.mxu0 0.0
    %666 = vmatprep.subr.mxu0 0.0
    %667 = vmatpush1.msra.mxu0 0.0
    %668 = vmatprep.subr.mxu0 0.0
    %669 = vmatpush1.msra.mxu0 0.0
    %670 = vmatprep.subr.mxu0 0.0
    %671 = vmatpush1.msra.mxu0 0.0
    %672 = vmatprep.subr.mxu0 0.0
    %673 = vmatpush1.msra.mxu0 0.0
    %674 = vmatprep.subr.mxu0 0.0
    %675 = vmatpush1.msra.mxu0 0.0
    %676 = vmatprep.subr.mxu0 0.0
    %677 = vmatpush1.msra.mxu0 0.0
    %678 = vmatprep.subr.mxu0 0.0
    %679 = vmatpush1.msra.mxu0 0.0
    %680 = vmatprep.subr.mxu0 0.0
    %681 = vmatpush1.msra.mxu0 0.0
    %682 = vmatprep.subr.mxu0 0.0
    %683 = vmatpush1.msra.mxu0 0.0
    %684 = vmatprep.subr.mxu0 0.0
    %685 = vmatpush1.msra.mxu0 0.0
    %686 = vmatprep.subr.mxu0 0.0
    %687 = vmatpush1.msra.mxu0 0.0
    %688 = vmatprep.subr.mxu0 0.0
    %689 = vmatpush1.msra.mxu0 0.0
    %690 = vmatprep.subr.mxu0 0.0
    %691 = vmatpush1.msra.mxu0 0.0
    %692 = vmatprep.subr.mxu0 0.0
    %693 = vmatpush1.msra.mxu0 0.0
    %694 = vmatprep.subr.mxu0 0.0
    %695 = vmatpush1.msra.mxu0 0.0
    %696 = vmatprep.subr.mxu0 0.0
    %697 = vmatpush1.msra.mxu0 0.0
    %698 = vmatprep.subr.mxu0 0.0
    %699 = vmatpush1.msra.mxu0 0.0
    %700 = vmatprep.subr.mxu0 0.0
    %701 = vmatpush1.msra.mxu0 0.0
    %702 = vmatprep.subr.mxu0 0.0
    %703 = vmatpush1.msra.mxu0 0.0
    %704 = vmatprep.subr.mxu0 0.0
    %705 = vmatpush1.msra.mxu0 0.0
    %706 = vmatprep.subr.mxu0 0.0
    %707 = vmatpush1.msra.mxu0 0.0
    %708 = vmatprep.subr.mxu0 0.0
    %709 = vmatpush1.msra.mxu0 0.0
    %710 = vmatprep.subr.mxu0 0.0
    %711 = vmatpush1.msra.mxu0 0.0
    %712 = vmatprep.subr.mxu0 0.0
    %713 = vmatpush1.msra.mxu0 0.0
    %714 = vmatprep.subr.mxu0 0.0
    %715 = vmatpush1.msra.mxu0 0.0
    %716 = vmatprep.subr.mxu0 0.0
    %717 = vmatpush1.msra.mxu0 0.0
    %718 = vmatprep.subr.mxu0 0.0
    %719 = vmatpush1.msra.mxu0 0.0
    %720 = vmatprep.mubr.f32.mxu0 0.0
    %721 = vmatmul.mubr.f32.gmra.mrb[0].mxu0 %v654
    %v722 = vpop.f32.mrb[0].mxu0
    %v723 = vadd.f32 0.0, %v722
    %v724 = vpop.f32.mrb[0].mxu0
    %725 = vdwg.mxu0
    %v727 = vrot.slane %v723, 4
    %v728 = vrot.slane %v723, 5
    %v731 = vadd.f32 %v202, %v727
    %v732 = vadd.f32 %v207, %v728
    %v733 = vtanh.pop %v731
    %v734 = vtanh.pop %v732
    %v737 = vrot.slane %v733, 4
    %v738 = vrot.slane %v734, 3
    %v739 = vsel %vm396, %v738, %v737
    %v740 = vsel %vm311, %v739, 0
    %742 = vmatprep.subr.mxu0 0.0
    %743 = vmatpush1.msra.mxu0 %v302
    %744 = vmatprep.subr.mxu0 0.0
    %745 = vmatpush1.msra.mxu0 %v303
    %746 = vmatprep.subr.mxu0 0.0
    %747 = vmatpush1.msra.mxu0 %v304
    %748 = vmatprep.subr.mxu0 0.0
    %749 = vmatpush1.msra.mxu0 %v305
    %750 = vmatprep.subr.mxu0 0.0
    %751 = vmatpush1.msra.mxu0 0.0
    %752 = vmatprep.subr.mxu0 0.0
    %753 = vmatpush1.msra.mxu0 0.0
    %754 = vmatprep.subr.mxu0 0.0
    %755 = vmatpush1.msra.mxu0 0.0
    %756 = vmatprep.subr.mxu0 0.0
    %757 = vmatpush1.msra.mxu0 0.0
    %758 = vmatprep.subr.mxu0 0.0
    %759 = vmatpush1.msra.mxu0 0.0
    %760 = vmatprep.subr.mxu0 0.0
    %761 = vmatpush1.msra.mxu0 0.0
    %762 = vmatprep.subr.mxu0 0.0
    %763 = vmatpush1.msra.mxu0 0.0
    %764 = vmatprep.subr.mxu0 0.0
    %765 = vmatpush1.msra.mxu0 0.0
    %766 = vmatprep.subr.mxu0 0.0
    %767 = vmatpush1.msra.mxu0 0.0
    %768 = vmatprep.subr.mxu0 0.0
    %769 = vmatpush1.msra.mxu0 0.0
    %770 = vmatprep.subr.mxu0 0.0
    %771 = vmatpush1.msra.mxu0 0.0
    %772 = vmatprep.subr.mxu0 0.0
    %773 = vmatpush1.msra.mxu0 0.0
    %774 = vmatprep.subr.mxu0 0.0
    %775 = vmatpush1.msra.mxu0 0.0
    %776 = vmatprep.subr.mxu0 0.0
    %777 = vmatpush1.msra.mxu0 0.0
    %778 = vmatprep.subr.mxu0 0.0
    %779 = vmatpush1.msra.mxu0 0.0
    %780 = vmatprep.subr.mxu0 0.0
    %781 = vmatpush1.msra.mxu0 0.0
    %782 = vmatprep.subr.mxu0 0.0
    %783 = vmatpush1.msra.mxu0 0.0
    %784 = vmatprep.subr.mxu0 0.0
    %785 = vmatpush1.msra.mxu0 0.0
    %786 = vmatprep.subr.mxu0 0.0
    %787 = vmatpush1.msra.mxu0 0.0
    %788 = vmatprep.subr.mxu0 0.0
    %789 = vmatpush1.msra.mxu0 0.0
    %790 = vmatprep.subr.mxu0 0.0
    %791 = vmatpush1.msra.mxu0 0.0
    %792 = vmatprep.subr.mxu0 0.0
    %793 = vmatpush1.msra.mxu0 0.0
    %794 = vmatprep.subr.mxu0 0.0
    %795 = vmatpush1.msra.mxu0 0.0
    %796 = vmatprep.subr.mxu0 0.0
    %797 = vmatpush1.msra.mxu0 0.0
    %798 = vmatprep.subr.mxu0 0.0
    %799 = vmatpush1.msra.mxu0 0.0
    %800 = vmatprep.subr.mxu0 0.0
    %801 = vmatpush1.msra.mxu0 0.0
    %802 = vmatprep.subr.mxu0 0.0
    %803 = vmatpush1.msra.mxu0 0.0
    %804 = vmatprep.subr.mxu0 0.0
    %805 = vmatpush1.msra.mxu0 0.0
    %806 = vmatprep.mubr.f32.mxu0 0.0
    %807 = vmatmul.mubr.f32.gmra.mrb[0].mxu0 %v740
    %v808 = vpop.f32.mrb[0].mxu0
    %v809 = vadd.f32 0.0, %v808
    %v810 = vpop.f32.mrb[0].mxu0
    %811 = vdwg.mxu0
    %v813 = vrot.slane %v809, 3
    %v814 = vrot.slane %v809, 4
    %v817 = vadd.f32 %v202, %v813
    %v818 = vadd.f32 %v207, %v814
    %v819 = vtanh.pop %v817
    %v820 = vtanh.pop %v818
    %v823 = vrot.slane %v819, 5
    %v824 = vrot.slane %v820, 4
    %v825 = vsel %vm396, %v824, %v823
    %v826 = vsel %vm311, %v825, 0
    %828 = vmatprep.subr.mxu0 0.0
    %829 = vmatpush1.msra.mxu0 %v302
    %830 = vmatprep.subr.mxu0 0.0
    %831 = vmatpush1.msra.mxu0 %v303
    %832 = vmatprep.subr.mxu0 0.0
    %833 = vmatpush1.msra.mxu0 %v304
    %834 = vmatprep.subr.mxu0 0.0
    %835 = vmatpush1.msra.mxu0 %v305
    %836 = vmatprep.subr.mxu0 0.0
    %837 = vmatpush1.msra.mxu0 0.0
    %838 = vmatprep.subr.mxu0 0.0
    %839 = vmatpush1.msra.mxu0 0.0
    %840 = vmatprep.subr.mxu0 0.0
    %841 = vmatpush1.msra.mxu0 0.0
    %842 = vmatprep.subr.mxu0 0.0
    %843 = vmatpush1.msra.mxu0 0.0
    %844 = vmatprep.subr.mxu0 0.0
    %845 = vmatpush1.msra.mxu0 0.0
    %846 = vmatprep.subr.mxu0 0.0
    %847 = vmatpush1.msra.mxu0 0.0
    %848 = vmatprep.subr.mxu0 0.0
    %849 = vmatpush1.msra.mxu0 0.0
    %850 = vmatprep.subr.mxu0 0.0
    %851 = vmatpush1.msra.mxu0 0.0
    %852 = vmatprep.subr.mxu0 0.0
    %853 = vmatpush1.msra.mxu0 0.0
    %854 = vmatprep.subr.mxu0 0.0
    %855 = vmatpush1.msra.mxu0 0.0
    %856 = vmatprep.subr.mxu0 0.0
    %857 = vmatpush1.msra.mxu0 0.0
    %858 = vmatprep.subr.mxu0 0.0
    %859 = vmatpush1.msra.mxu0 0.0
    %860 = vmatprep.subr.mxu0 0.0
    %861 = vmatpush1.msra.mxu0 0.0
    %862 = vmatprep.subr.mxu0 0.0
    %863 = vmatpush1.msra.mxu0 0.0
    %864 = vmatprep.subr.mxu0 0.0
    %865 = vmatpush1.msra.mxu0 0.0
    %866 = vmatprep.subr.mxu0 0.0
    %867 = vmatpush1.msra.mxu0 0.0
    %868 = vmatprep.subr.mxu0 0.0
    %869 = vmatpush1.msra.mxu0 0.0
    %870 = vmatprep.subr.mxu0 0.0
    %871 = vmatpush1.msra.mxu0 0.0
    %872 = vmatprep.subr.mxu0 0.0
    %873 = vmatpush1.msra.mxu0 0.0
    %874 = vmatprep.subr.mxu0 0.0
    %875 = vmatpush1.msra.mxu0 0.0
    %876 = vmatprep.subr.mxu0 0.0
    %877 = vmatpush1.msra.mxu0 0.0
    %878 = vmatprep.subr.mxu0 0.0
    %879 = vmatpush1.msra.mxu0 0.0
    %880 = vmatprep.subr.mxu0 0.0
    %881 = vmatpush1.msra.mxu0 0.0
    %882 = vmatprep.subr.mxu0 0.0
    %883 = vmatpush1.msra.mxu0 0.0
    %884 = vmatprep.subr.mxu0 0.0
    %885 = vmatpush1.msra.mxu0 0.0
    %886 = vmatprep.subr.mxu0 0.0
    %887 = vmatpush1.msra.mxu0 0.0
    %888 = vmatprep.subr.mxu0 0.0
    %889 = vmatpush1.msra.mxu0 0.0
    %890 = vmatprep.subr.mxu0 0.0
    %891 = vmatpush1.msra.mxu0 0.0
    %892 = vmatprep.mubr.f32.mxu0 0.0
    %893 = vmatmul.mubr.f32.gmra.mrb[0].mxu0 %v826
    %v894 = vpop.f32.mrb[0].mxu0
    %v895 = vadd.f32 0.0, %v894
    %v896 = vpop.f32.mrb[0].mxu0
    %897 = vdwg.mxu0
    %v899 = vrot.slane %v895, 2
    %v900 = vrot.slane %v895, 3
    %v903 = vadd.f32 %v202, %v899
    %v904 = vadd.f32 %v207, %v900
    %v905 = vtanh.pop %v903
    %v906 = vtanh.pop %v904
    %v909 = vrot.slane %v905, 6
    %v910 = vrot.slane %v906, 5
    %v911 = vsel %vm396, %v910, %v909
    %v912 = vsel %vm311, %v911, 0
    %914 = vmatprep.subr.mxu0 0.0
    %915 = vmatpush1.msra.mxu0 %v302
    %916 = vmatprep.subr.mxu0 0.0
    %917 = vmatpush1.msra.mxu0 %v303
    %918 = vmatprep.subr.mxu0 0.0
    %919 = vmatpush1.msra.mxu0 %v304
    %920 = vmatprep.subr.mxu0 0.0
    %921 = vmatpush1.msra.mxu0 %v305
    %922 = vmatprep.subr.mxu0 0.0
    %923 = vmatpush1.msra.mxu0 0.0
    %924 = vmatprep.subr.mxu0 0.0
    %925 = vmatpush1.msra.mxu0 0.0
    %926 = vmatprep.subr.mxu0 0.0
    %927 = vmatpush1.msra.mxu0 0.0
    %928 = vmatprep.subr.mxu0 0.0
    %929 = vmatpush1.msra.mxu0 0.0
    %930 = vmatprep.subr.mxu0 0.0
    %931 = vmatpush1.msra.mxu0 0.0
    %932 = vmatprep.subr.mxu0 0.0
    %933 = vmatpush1.msra.mxu0 0.0
    %934 = vmatprep.subr.mxu0 0.0
    %935 = vmatpush1.msra.mxu0 0.0
    %936 = vmatprep.subr.mxu0 0.0
    %937 = vmatpush1.msra.mxu0 0.0
    %938 = vmatprep.subr.mxu0 0.0
    %939 = vmatpush1.msra.mxu0 0.0
    %940 = vmatprep.subr.mxu0 0.0
    %941 = vmatpush1.msra.mxu0 0.0
    %942 = vmatprep.subr.mxu0 0.0
    %943 = vmatpush1.msra.mxu0 0.0
    %944 = vmatprep.subr.mxu0 0.0
    %945 = vmatpush1.msra.mxu0 0.0
    %946 = vmatprep.subr.mxu0 0.0
    %947 = vmatpush1.msra.mxu0 0.0
    %948 = vmatprep.subr.mxu0 0.0
    %949 = vmatpush1.msra.mxu0 0.0
    %950 = vmatprep.subr.mxu0 0.0
    %951 = vmatpush1.msra.mxu0 0.0
    %952 = vmatprep.subr.mxu0 0.0
    %953 = vmatpush1.msra.mxu0 0.0
    %954 = vmatprep.subr.mxu0 0.0
    %955 = vmatpush1.msra.mxu0 0.0
    %956 = vmatprep.subr.mxu0 0.0
    %957 = vmatpush1.msra.mxu0 0.0
    %958 = vmatprep.subr.mxu0 0.0
    %959 = vmatpush1.msra.mxu0 0.0
    %960 = vmatprep.subr.mxu0 0.0
    %961 = vmatpush1.msra.mxu0 0.0
    %962 = vmatprep.subr.mxu0 0.0
    %963 = vmatpush1.msra.mxu0 0.0
    %964 = vmatprep.subr.mxu0 0.0
    %965 = vmatpush1.msra.mxu0 0.0
    %966 = vmatprep.subr.mxu0 0.0
    %967 = vmatpush1.msra.mxu0 0.0
    %968 = vmatprep.subr.mxu0 0.0
    %969 = vmatpush1.msra.mxu0 0.0
    %970 = vmatprep.subr.mxu0 0.0
    %971 = vmatpush1.msra.mxu0 0.0
    %972 = vmatprep.subr.mxu0 0.0
    %973 = vmatpush1.msra.mxu0 0.0
    %974 = vmatprep.subr.mxu0 0.0
    %975 = vmatpush1.msra.mxu0 0.0
    %976 = vmatprep.subr.mxu0 0.0
    %977 = vmatpush1.msra.mxu0 0.0
    %978 = vmatprep.mubr.f32.mxu0 0.0
    %979 = vmatmul.mubr.f32.gmra.mrb[0].mxu0 %v912
    %v980 = vpop.f32.mrb[0].mxu0
    %v981 = vadd.f32 0.0, %v980
    %v982 = vpop.f32.mrb[0].mxu0
    %983 = vdwg.mxu0
    %v985 = vrot.slane %v981, 1
    %v986 = vrot.slane %v981, 2
    %v989 = vadd.f32 %v202, %v985
    %v990 = vadd.f32 %v207, %v986
    %v991 = vtanh.pop %v989
    %v992 = vtanh.pop %v990
    %v995 = vrot.slane %v991, 7
    %v996 = vrot.slane %v992, 6
    %v997 = vsel %vm396, %v996, %v995
    %v998 = vsel %vm311, %v997, 0
    %1000 = vmatprep.subr.mxu0 0.0
    %1001 = vmatpush1.msra.mxu0 %v306
    %1002 = vmatprep.subr.mxu0 0.0
    %1003 = vmatpush1.msra.mxu0 %v307
    %1004 = vmatprep.subr.mxu0 0.0
    %1005 = vmatpush1.msra.mxu0 %v308
    %1006 = vmatprep.subr.mxu0 0.0
    %1007 = vmatpush1.msra.mxu0 %v309
    %1008 = vmatprep.subr.mxu0 0.0
    %1009 = vmatpush1.msra.mxu0 0.0
    %1010 = vmatprep.subr.mxu0 0.0
    %1011 = vmatpush1.msra.mxu0 0.0
    %1012 = vmatprep.subr.mxu0 0.0
    %1013 = vmatpush1.msra.mxu0 0.0
    %1014 = vmatprep.subr.mxu0 0.0
    %1015 = vmatpush1.msra.mxu0 0.0
    %1016 = vmatprep.subr.mxu0 0.0
    %1017 = vmatpush1.msra.mxu0 0.0
    %1018 = vmatprep.subr.mxu0 0.0
    %1019 = vmatpush1.msra.mxu0 0.0
    %1020 = vmatprep.subr.mxu0 0.0
    %1021 = vmatpush1.msra.mxu0 0.0
    %1022 = vmatprep.subr.mxu0 0.0
    %1023 = vmatpush1.msra.mxu0 0.0
    %1024 = vmatprep.subr.mxu0 0.0
    %1025 = vmatpush1.msra.mxu0 0.0
    %1026 = vmatprep.subr.mxu0 0.0
    %1027 = vmatpush1.msra.mxu0 0.0
    %1028 = vmatprep.subr.mxu0 0.0
    %1029 = vmatpush1.msra.mxu0 0.0
    %1030 = vmatprep.subr.mxu0 0.0
    %1031 = vmatpush1.msra.mxu0 0.0
    %1032 = vmatprep.subr.mxu0 0.0
    %1033 = vmatpush1.msra.mxu0 0.0
    %1034 = vmatprep.subr.mxu0 0.0
    %1035 = vmatpush1.msra.mxu0 0.0
    %1036 = vmatprep.subr.mxu0 0.0
    %1037 = vmatpush1.msra.mxu0 0.0
    %1038 = vmatprep.subr.mxu0 0.0
    %1039 = vmatpush1.msra.mxu0 0.0
    %1040 = vmatprep.subr.mxu0 0.0
    %1041 = vmatpush1.msra.mxu0 0.0
    %1042 = vmatprep.subr.mxu0 0.0
    %1043 = vmatpush1.msra.mxu0 0.0
    %1044 = vmatprep.subr.mxu0 0.0
    %1045 = vmatpush1.msra.mxu0 0.0
    %1046 = vmatprep.subr.mxu0 0.0
    %1047 = vmatpush1.msra.mxu0 0.0
    %1048 = vmatprep.subr.mxu0 0.0
    %1049 = vmatpush1.msra.mxu0 0.0
    %1050 = vmatprep.subr.mxu0 0.0
    %1051 = vmatpush1.msra.mxu0 0.0
    %1052 = vmatprep.subr.mxu0 0.0
    %1053 = vmatpush1.msra.mxu0 0.0
    %1054 = vmatprep.subr.mxu0 0.0
    %1055 = vmatpush1.msra.mxu0 0.0
    %1056 = vmatprep.subr.mxu0 0.0
    %1057 = vmatpush1.msra.mxu0 0.0
    %1058 = vmatprep.subr.mxu0 0.0
    %1059 = vmatpush1.msra.mxu0 0.0
    %1060 = vmatprep.subr.mxu0 0.0
    %1061 = vmatpush1.msra.mxu0 0.0
    %1062 = vmatprep.subr.mxu0 0.0
    %1063 = vmatpush1.msra.mxu0 0.0
    %1064 = vmatprep.mubr.f32.mxu0 0.0
    %1065 = vmatmul.mubr.f32.gmra.mrb[0].mxu0 %v998
    %v1066 = vpop.f32.mrb[0].mxu0
    %v1067 = vadd.f32 0.0, %v1066
    %v1068 = vpop.f32.mrb[0].mxu0
    %1069 = vdwg.mxu0
    %v1071 = vrot.slane %v1067, 1
    %v1074 = vadd.f32 %v294, %v1067
    %v1075 = vadd.f32 %v299, %v1071
    %v1076 = vtanh.pop %v1074
    %v1077 = vtanh.pop %v1075
    %v1080 = vrot.slane %v1077, 7
    %v1081 = vsel %vm396, %v1080, %v1076
    %v1082 = vsel %vm311, %v1081, 0
    %1084 = vmatprep.subr.mxu0 0.0
    %1085 = vmatpush1.msra.mxu0 %v306
    %1086 = vmatprep.subr.mxu0 0.0
    %1087 = vmatpush1.msra.mxu0 %v307
    %1088 = vmatprep.subr.mxu0 0.0
    %1089 = vmatpush1.msra.mxu0 %v308
    %1090 = vmatprep.subr.mxu0 0.0
    %1091 = vmatpush1.msra.mxu0 %v309
    %1092 = vmatprep.subr.mxu0 0.0
    %1093 = vmatpush1.msra.mxu0 0.0
    %1094 = vmatprep.subr.mxu0 0.0
    %1095 = vmatpush1.msra.mxu0 0.0
    %1096 = vmatprep.subr.mxu0 0.0
    %1097 = vmatpush1.msra.mxu0 0.0
    %1098 = vmatprep.subr.mxu0 0.0
    %1099 = vmatpush1.msra.mxu0 0.0
    %1100 = vmatprep.subr.mxu0 0.0
    %1101 = vmatpush1.msra.mxu0 0.0
    %1102 = vmatprep.subr.mxu0 0.0
    %1103 = vmatpush1.msra.mxu0 0.0
    %1104 = vmatprep.subr.mxu0 0.0
    %1105 = vmatpush1.msra.mxu0 0.0
    %1106 = vmatprep.subr.mxu0 0.0
    %1107 = vmatpush1.msra.mxu0 0.0
    %1108 = vmatprep.subr.mxu0 0.0
    %1109 = vmatpush1.msra.mxu0 0.0
    %1110 = vmatprep.subr.mxu0 0.0
    %1111 = vmatpush1.msra.mxu0 0.0
    %1112 = vmatprep.subr.mxu0 0.0
    %1113 = vmatpush1.msra.mxu0 0.0
    %1114 = vmatprep.subr.mxu0 0.0
    %1115 = vmatpush1.msra.mxu0 0.0
    %1116 = vmatprep.subr.mxu0 0.0
    %1117 = vmatpush1.msra.mxu0 0.0
    %1118 = vmatprep.subr.mxu0 0.0
    %1119 = vmatpush1.msra.mxu0 0.0
    %1120 = vmatprep.subr.mxu0 0.0
    %1121 = vmatpush1.msra.mxu0 0.0
    %1122 = vmatprep.subr.mxu0 0.0
    %1123 = vmatpush1.msra.mxu0 0.0
    %1124 = vmatprep.subr.mxu0 0.0
    %1125 = vmatpush1.msra.mxu0 0.0
    %1126 = vmatprep.subr.mxu0 0.0
    %1127 = vmatpush1.msra.mxu0 0.0
    %1128 = vmatprep.subr.mxu0 0.0
    %1129 = vmatpush1.msra.mxu0 0.0
    %1130 = vmatprep.subr.mxu0 0.0
    %1131 = vmatpush1.msra.mxu0 0.0
    %1132 = vmatprep.subr.mxu0 0.0
    %1133 = vmatpush1.msra.mxu0 0.0
    %1134 = vmatprep.subr.mxu0 0.0
    %1135 = vmatpush1.msra.mxu0 0.0
    %1136 = vmatprep.subr.mxu0 0.0
    %1137 = vmatpush1.msra.mxu0 0.0
    %1138 = vmatprep.subr.mxu0 0.0
    %1139 = vmatpush1.msra.mxu0 0.0
    %1140 = vmatprep.subr.mxu0 0.0
    %1141 = vmatpush1.msra.mxu0 0.0
    %1142 = vmatprep.subr.mxu0 0.0
    %1143 = vmatpush1.msra.mxu0 0.0
    %1144 = vmatprep.subr.mxu0 0.0
    %1145 = vmatpush1.msra.mxu0 0.0
    %1146 = vmatprep.subr.mxu0 0.0
    %1147 = vmatpush1.msra.mxu0 0.0
    %1148 = vmatprep.mubr.f32.mxu0 0.0
    %1149 = vmatmul.mubr.f32.gmra.mrb[0].mxu0 %v1082
    %v1150 = vpop.f32.mrb[0].mxu0
    %v1151 = vadd.f32 0.0, %v1150
    %v1152 = vpop.f32.mrb[0].mxu0
    %1153 = vdwg.mxu0
    %v1155 = vrot.slane %v1151, 7
    %v1158 = vadd.f32 %v294, %v1155
    %v1159 = vadd.f32 %v299, %v1151
    %v1160 = vtanh.pop %v1158
    %v1161 = vtanh.pop %v1159
    %v1164 = vrot.slane %v1160, 1
    %v1165 = vsel %vm396, %v1161, %v1164
    %v1166 = vsel %vm311, %v1165, 0
    %1168 = vmatprep.subr.mxu0 0.0
    %1169 = vmatpush1.msra.mxu0 %v306
    %1170 = vmatprep.subr.mxu0 0.0
    %1171 = vmatpush1.msra.mxu0 %v307
    %1172 = vmatprep.subr.mxu0 0.0
    %1173 = vmatpush1.msra.mxu0 %v308
    %1174 = vmatprep.subr.mxu0 0.0
    %1175 = vmatpush1.msra.mxu0 %v309
    %1176 = vmatprep.subr.mxu0 0.0
    %1177 = vmatpush1.msra.mxu0 0.0
    %1178 = vmatprep.subr.mxu0 0.0
    %1179 = vmatpush1.msra.mxu0 0.0
    %1180 = vmatprep.subr.mxu0 0.0
    %1181 = vmatpush1.msra.mxu0 0.0
    %1182 = vmatprep.subr.mxu0 0.0
    %1183 = vmatpush1.msra.mxu0 0.0
    %1184 = vmatprep.subr.mxu0 0.0
    %1185 = vmatpush1.msra.mxu0 0.0
    %1186 = vmatprep.subr.mxu0 0.0
    %1187 = vmatpush1.msra.mxu0 0.0
    %1188 = vmatprep.subr.mxu0 0.0
    %1189 = vmatpush1.msra.mxu0 0.0
    %1190 = vmatprep.subr.mxu0 0.0
    %1191 = vmatpush1.msra.mxu0 0.0
    %1192 = vmatprep.subr.mxu0 0.0
    %1193 = vmatpush1.msra.mxu0 0.0
    %1194 = vmatprep.subr.mxu0 0.0
    %1195 = vmatpush1.msra.mxu0 0.0
    %1196 = vmatprep.subr.mxu0 0.0
    %1197 = vmatpush1.msra.mxu0 0.0
    %1198 = vmatprep.subr.mxu0 0.0
    %1199 = vmatpush1.msra.mxu0 0.0
    %1200 = vmatprep.subr.mxu0 0.0
    %1201 = vmatpush1.msra.mxu0 0.0
    %1202 = vmatprep.subr.mxu0 0.0
    %1203 = vmatpush1.msra.mxu0 0.0
    %1204 = vmatprep.subr.mxu0 0.0
    %1205 = vmatpush1.msra.mxu0 0.0
    %1206 = vmatprep.subr.mxu0 0.0
    %1207 = vmatpush1.msra.mxu0 0.0
    %1208 = vmatprep.subr.mxu0 0.0
    %1209 = vmatpush1.msra.mxu0 0.0
    %1210 = vmatprep.subr.mxu0 0.0
    %1211 = vmatpush1.msra.mxu0 0.0
    %1212 = vmatprep.subr.mxu0 0.0
    %1213 = vmatpush1.msra.mxu0 0.0
    %1214 = vmatprep.subr.mxu0 0.0
    %1215 = vmatpush1.msra.mxu0 0.0
    %1216 = vmatprep.subr.mxu0 0.0
    %1217 = vmatpush1.msra.mxu0 0.0
    %1218 = vmatprep.subr.mxu0 0.0
    %1219 = vmatpush1.msra.mxu0 0.0
    %1220 = vmatprep.subr.mxu0 0.0
    %1221 = vmatpush1.msra.mxu0 0.0
    %1222 = vmatprep.subr.mxu0 0.0
    %1223 = vmatpush1.msra.mxu0 0.0
    %1224 = vmatprep.subr.mxu0 0.0
    %1225 = vmatpush1.msra.mxu0 0.0
    %1226 = vmatprep.subr.mxu0 0.0
    %1227 = vmatpush1.msra.mxu0 0.0
    %1228 = vmatprep.subr.mxu0 0.0
    %1229 = vmatpush1.msra.mxu0 0.0
    %1230 = vmatprep.subr.mxu0 0.0
    %1231 = vmatpush1.msra.mxu0 0.0
    %1232 = vmatprep.mubr.f32.mxu0 0.0
    %1233 = vmatmul.mubr.f32.gmra.mrb[0].mxu0 %v1166
    %v1234 = vpop.f32.mrb[0].mxu0
    %v1235 = vadd.f32 0.0, %v1234
    %v1236 = vpop.f32.mrb[0].mxu0
    %1237 = vdwg.mxu0
    %v1239 = vrot.slane %v1235, 6
    %v1240 = vrot.slane %v1235, 7
    %v1243 = vadd.f32 %v294, %v1239
    %v1244 = vadd.f32 %v299, %v1240
    %v1245 = vtanh.pop %v1243
    %v1246 = vtanh.pop %v1244
    %v1249 = vrot.slane %v1245, 2
    %v1250 = vrot.slane %v1246, 1
    %v1251 = vsel %vm396, %v1250, %v1249
    %v1252 = vsel %vm311, %v1251, 0
    %1254 = vmatprep.subr.mxu0 0.0
    %1255 = vmatpush1.msra.mxu0 %v306
    %1256 = vmatprep.subr.mxu0 0.0
    %1257 = vmatpush1.msra.mxu0 %v307
    %1258 = vmatprep.subr.mxu0 0.0
    %1259 = vmatpush1.msra.mxu0 %v308
    %1260 = vmatprep.subr.mxu0 0.0
    %1261 = vmatpush1.msra.mxu0 %v309
    %1262 = vmatprep.subr.mxu0 0.0
    %1263 = vmatpush1.msra.mxu0 0.0
    %1264 = vmatprep.subr.mxu0 0.0
    %1265 = vmatpush1.msra.mxu0 0.0
    %1266 = vmatprep.subr.mxu0 0.0
    %1267 = vmatpush1.msra.mxu0 0.0
    %1268 = vmatprep.subr.mxu0 0.0
    %1269 = vmatpush1.msra.mxu0 0.0
    %1270 = vmatprep.subr.mxu0 0.0
    %1271 = vmatpush1.msra.mxu0 0.0
    %1272 = vmatprep.subr.mxu0 0.0
    %1273 = vmatpush1.msra.mxu0 0.0
    %1274 = vmatprep.subr.mxu0 0.0
    %1275 = vmatpush1.msra.mxu0 0.0
    %1276 = vmatprep.subr.mxu0 0.0
    %1277 = vmatpush1.msra.mxu0 0.0
    %1278 = vmatprep.subr.mxu0 0.0
    %1279 = vmatpush1.msra.mxu0 0.0
    %1280 = vmatprep.subr.mxu0 0.0
    %1281 = vmatpush1.msra.mxu0 0.0
    %1282 = vmatprep.subr.mxu0 0.0
    %1283 = vmatpush1.msra.mxu0 0.0
    %1284 = vmatprep.subr.mxu0 0.0
    %1285 = vmatpush1.msra.mxu0 0.0
    %1286 = vmatprep.subr.mxu0 0.0
    %1287 = vmatpush1.msra.mxu0 0.0
    %1288 = vmatprep.subr.mxu0 0.0
    %1289 = vmatpush1.msra.mxu0 0.0
    %1290 = vmatprep.subr.mxu0 0.0
    %1291 = vmatpush1.msra.mxu0 0.0
    %1292 = vmatprep.subr.mxu0 0.0
    %1293 = vmatpush1.msra.mxu0 0.0
    %1294 = vmatprep.subr.mxu0 0.0
    %1295 = vmatpush1.msra.mxu0 0.0
    %1296 = vmatprep.subr.mxu0 0.0
    %1297 = vmatpush1.msra.mxu0 0.0
    %1298 = vmatprep.subr.mxu0 0.0
    %1299 = vmatpush1.msra.mxu0 0.0
    %1300 = vmatprep.subr.mxu0 0.0
    %1301 = vmatpush1.msra.mxu0 0.0
    %1302 = vmatprep.subr.mxu0 0.0
    %1303 = vmatpush1.msra.mxu0 0.0
    %1304 = vmatprep.subr.mxu0 0.0
    %1305 = vmatpush1.msra.mxu0 0.0
    %1306 = vmatprep.subr.mxu0 0.0
    %1307 = vmatpush1.msra.mxu0 0.0
    %1308 = vmatprep.subr.mxu0 0.0
    %1309 = vmatpush1.msra.mxu0 0.0
    %1310 = vmatprep.subr.mxu0 0.0
    %1311 = vmatpush1.msra.mxu0 0.0
    %1312 = vmatprep.subr.mxu0 0.0
    %1313 = vmatpush1.msra.mxu0 0.0
    %1314 = vmatprep.subr.mxu0 0.0
    %1315 = vmatpush1.msra.mxu0 0.0
    %1316 = vmatprep.subr.mxu0 0.0
    %1317 = vmatpush1.msra.mxu0 0.0
    %1318 = vmatprep.mubr.f32.mxu0 0.0
    %1319 = vmatmul.mubr.f32.gmra.mrb[0].mxu0 %v1252
    %v1320 = vpop.f32.mrb[0].mxu0
    %v1321 = vadd.f32 0.0, %v1320
    %v1322 = vpop.f32.mrb[0].mxu0
    %1323 = vdwg.mxu0
    %v1325 = vrot.slane %v1321, 5
    %v1326 = vrot.slane %v1321, 6
    %v1329 = vadd.f32 %v294, %v1325
    %v1330 = vadd.f32 %v299, %v1326
    %v1331 = vtanh.pop %v1329
    %v1332 = vtanh.pop %v1330
    %v1335 = vrot.slane %v1331, 3
    %v1336 = vrot.slane %v1332, 2
    %v1337 = vsel %vm396, %v1336, %v1335
    %v1338 = vsel %vm311, %v1337, 0
    %1340 = vmatprep.subr.mxu0 0.0
    %1341 = vmatpush1.msra.mxu0 %v306
    %1342 = vmatprep.subr.mxu0 0.0
    %1343 = vmatpush1.msra.mxu0 %v307
    %1344 = vmatprep.subr.mxu0 0.0
    %1345 = vmatpush1.msra.mxu0 %v308
    %1346 = vmatprep.subr.mxu0 0.0
    %1347 = vmatpush1.msra.mxu0 %v309
    %1348 = vmatprep.subr.mxu0 0.0
    %1349 = vmatpush1.msra.mxu0 0.0
    %1350 = vmatprep.subr.mxu0 0.0
    %1351 = vmatpush1.msra.mxu0 0.0
    %1352 = vmatprep.subr.mxu0 0.0
    %1353 = vmatpush1.msra.mxu0 0.0
    %1354 = vmatprep.subr.mxu0 0.0
    %1355 = vmatpush1.msra.mxu0 0.0
    %1356 = vmatprep.subr.mxu0 0.0
    %1357 = vmatpush1.msra.mxu0 0.0
    %1358 = vmatprep.subr.mxu0 0.0
    %1359 = vmatpush1.msra.mxu0 0.0
    %1360 = vmatprep.subr.mxu0 0.0
    %1361 = vmatpush1.msra.mxu0 0.0
    %1362 = vmatprep.subr.mxu0 0.0
    %1363 = vmatpush1.msra.mxu0 0.0
    %1364 = vmatprep.subr.mxu0 0.0
    %1365 = vmatpush1.msra.mxu0 0.0
    %1366 = vmatprep.subr.mxu0 0.0
    %1367 = vmatpush1.msra.mxu0 0.0
    %1368 = vmatprep.subr.mxu0 0.0
    %1369 = vmatpush1.msra.mxu0 0.0
    %1370 = vmatprep.subr.mxu0 0.0
    %1371 = vmatpush1.msra.mxu0 0.0
    %1372 = vmatprep.subr.mxu0 0.0
    %1373 = vmatpush1.msra.mxu0 0.0
    %1374 = vmatprep.subr.mxu0 0.0
    %1375 = vmatpush1.msra.mxu0 0.0
    %1376 = vmatprep.subr.mxu0 0.0
    %1377 = vmatpush1.msra.mxu0 0.0
    %1378 = vmatprep.subr.mxu0 0.0
    %1379 = vmatpush1.msra.mxu0 0.0
    %1380 = vmatprep.subr.mxu0 0.0
    %1381 = vmatpush1.msra.mxu0 0.0
    %1382 = vmatprep.subr.mxu0 0.0
    %1383 = vmatpush1.msra.mxu0 0.0
    %1384 = vmatprep.subr.mxu0 0.0
    %1385 = vmatpush1.msra.mxu0 0.0
    %1386 = vmatprep.subr.mxu0 0.0
    %1387 = vmatpush1.msra.mxu0 0.0
    %1388 = vmatprep.subr.mxu0 0.0
    %1389 = vmatpush1.msra.mxu0 0.0
    %1390 = vmatprep.subr.mxu0 0.0
    %1391 = vmatpush1.msra.mxu0 0.0
    %1392 = vmatprep.subr.mxu0 0.0
    %1393 = vmatpush1.msra.mxu0 0.0
    %1394 = vmatprep.subr.mxu0 0.0
    %1395 = vmatpush1.msra.mxu0 0.0
    %1396 = vmatprep.subr.mxu0 0.0
    %1397 = vmatpush1.msra.mxu0 0.0
    %1398 = vmatprep.subr.mxu0 0.0
    %1399 = vmatpush1.msra.mxu0 0.0
    %1400 = vmatprep.subr.mxu0 0.0
    %1401 = vmatpush1.msra.mxu0 0.0
    %1402 = vmatprep.subr.mxu0 0.0
    %1403 = vmatpush1.msra.mxu0 0.0
    %1404 = vmatprep.mubr.f32.mxu0 0.0
    %1405 = vmatmul.mubr.f32.gmra.mrb[0].mxu0 %v1338
    %v1406 = vpop.f32.mrb[0].mxu0
    %v1407 = vadd.f32 0.0, %v1406
    %v1408 = vpop.f32.mrb[0].mxu0
    %1409 = vdwg.mxu0
    %v1411 = vrot.slane %v1407, 4
    %v1412 = vrot.slane %v1407, 5
    %v1415 = vadd.f32 %v294, %v1411
    %v1416 = vadd.f32 %v299, %v1412
    %v1417 = vtanh.pop %v1415
    %v1418 = vtanh.pop %v1416
    %v1421 = vrot.slane %v1417, 4
    %v1422 = vrot.slane %v1418, 3
    %v1423 = vsel %vm396, %v1422, %v1421
    %v1424 = vsel %vm311, %v1423, 0
    %1426 = vmatprep.subr.mxu0 0.0
    %1427 = vmatpush1.msra.mxu0 %v306
    %1428 = vmatprep.subr.mxu0 0.0
    %1429 = vmatpush1.msra.mxu0 %v307
    %1430 = vmatprep.subr.mxu0 0.0
    %1431 = vmatpush1.msra.mxu0 %v308
    %1432 = vmatprep.subr.mxu0 0.0
    %1433 = vmatpush1.msra.mxu0 %v309
    %1434 = vmatprep.subr.mxu0 0.0
    %1435 = vmatpush1.msra.mxu0 0.0
    %1436 = vmatprep.subr.mxu0 0.0
    %1437 = vmatpush1.msra.mxu0 0.0
    %1438 = vmatprep.subr.mxu0 0.0
    %1439 = vmatpush1.msra.mxu0 0.0
    %1440 = vmatprep.subr.mxu0 0.0
    %1441 = vmatpush1.msra.mxu0 0.0
    %1442 = vmatprep.subr.mxu0 0.0
    %1443 = vmatpush1.msra.mxu0 0.0
    %1444 = vmatprep.subr.mxu0 0.0
    %1445 = vmatpush1.msra.mxu0 0.0
    %1446 = vmatprep.subr.mxu0 0.0
    %1447 = vmatpush1.msra.mxu0 0.0
    %1448 = vmatprep.subr.mxu0 0.0
    %1449 = vmatpush1.msra.mxu0 0.0
    %1450 = vmatprep.subr.mxu0 0.0
    %1451 = vmatpush1.msra.mxu0 0.0
    %1452 = vmatprep.subr.mxu0 0.0
    %1453 = vmatpush1.msra.mxu0 0.0
    %1454 = vmatprep.subr.mxu0 0.0
    %1455 = vmatpush1.msra.mxu0 0.0
    %1456 = vmatprep.subr.mxu0 0.0
    %1457 = vmatpush1.msra.mxu0 0.0
    %1458 = vmatprep.subr.mxu0 0.0
    %1459 = vmatpush1.msra.mxu0 0.0
    %1460 = vmatprep.subr.mxu0 0.0
    %1461 = vmatpush1.msra.mxu0 0.0
    %1462 = vmatprep.subr.mxu0 0.0
    %1463 = vmatpush1.msra.mxu0 0.0
    %1464 = vmatprep.subr.mxu0 0.0
    %1465 = vmatpush1.msra.mxu0 0.0
    %1466 = vmatprep.subr.mxu0 0.0
    %1467 = vmatpush1.msra.mxu0 0.0
    %1468 = vmatprep.subr.mxu0 0.0
    %1469 = vmatpush1.msra.mxu0 0.0
    %1470 = vmatprep.subr.mxu0 0.0
    %1471 = vmatpush1.msra.mxu0 0.0
    %1472 = vmatprep.subr.mxu0 0.0
    %1473 = vmatpush1.msra.mxu0 0.0
    %1474 = vmatprep.subr.mxu0 0.0
    %1475 = vmatpush1.msra.mxu0 0.0
    %1476 = vmatprep.subr.mxu0 0.0
    %1477 = vmatpush1.msra.mxu0 0.0
    %1478 = vmatprep.subr.mxu0 0.0
    %1479 = vmatpush1.msra.mxu0 0.0
    %1480 = vmatprep.subr.mxu0 0.0
    %1481 = vmatpush1.msra.mxu0 0.0
    %1482 = vmatprep.subr.mxu0 0.0
    %1483 = vmatpush1.msra.mxu0 0.0
    %1484 = vmatprep.subr.mxu0 0.0
    %1485 = vmatpush1.msra.mxu0 0.0
    %1486 = vmatprep.subr.mxu0 0.0
    %1487 = vmatpush1.msra.mxu0 0.0
    %1488 = vmatprep.subr.mxu0 0.0
    %1489 = vmatpush1.msra.mxu0 0.0
    %1490 = vmatprep.mubr.f32.mxu0 0.0
    %1491 = vmatmul.mubr.f32.gmra.mrb[0].mxu0 %v1424
    %v1492 = vpop.f32.mrb[0].mxu0
    %v1493 = vadd.f32 0.0, %v1492
    %v1494 = vpop.f32.mrb[0].mxu0
    %1495 = vdwg.mxu0
    %v1497 = vrot.slane %v1493, 3
    %v1498 = vrot.slane %v1493, 4
    %v1501 = vadd.f32 %v294, %v1497
    %v1502 = vadd.f32 %v299, %v1498
    %v1503 = vtanh.pop %v1501
    %v1504 = vtanh.pop %v1502
    %v1507 = vrot.slane %v1503, 5
    %v1508 = vrot.slane %v1504, 4
    %v1509 = vsel %vm396, %v1508, %v1507
    %v1510 = vsel %vm311, %v1509, 0
    %1512 = vmatprep.subr.mxu0 0.0
    %1513 = vmatpush1.msra.mxu0 %v306
    %1514 = vmatprep.subr.mxu0 0.0
    %1515 = vmatpush1.msra.mxu0 %v307
    %1516 = vmatprep.subr.mxu0 0.0
    %1517 = vmatpush1.msra.mxu0 %v308
    %1518 = vmatprep.subr.mxu0 0.0
    %1519 = vmatpush1.msra.mxu0 %v309
    %1520 = vmatprep.subr.mxu0 0.0
    %1521 = vmatpush1.msra.mxu0 0.0
    %1522 = vmatprep.subr.mxu0 0.0
    %1523 = vmatpush1.msra.mxu0 0.0
    %1524 = vmatprep.subr.mxu0 0.0
    %1525 = vmatpush1.msra.mxu0 0.0
    %1526 = vmatprep.subr.mxu0 0.0
    %1527 = vmatpush1.msra.mxu0 0.0
    %1528 = vmatprep.subr.mxu0 0.0
    %1529 = vmatpush1.msra.mxu0 0.0
    %1530 = vmatprep.subr.mxu0 0.0
    %1531 = vmatpush1.msra.mxu0 0.0
    %1532 = vmatprep.subr.mxu0 0.0
    %1533 = vmatpush1.msra.mxu0 0.0
    %1534 = vmatprep.subr.mxu0 0.0
    %1535 = vmatpush1.msra.mxu0 0.0
    %1536 = vmatprep.subr.mxu0 0.0
    %1537 = vmatpush1.msra.mxu0 0.0
    %1538 = vmatprep.subr.mxu0 0.0
    %1539 = vmatpush1.msra.mxu0 0.0
    %1540 = vmatprep.subr.mxu0 0.0
    %1541 = vmatpush1.msra.mxu0 0.0
    %1542 = vmatprep.subr.mxu0 0.0
    %1543 = vmatpush1.msra.mxu0 0.0
    %1544 = vmatprep.subr.mxu0 0.0
    %1545 = vmatpush1.msra.mxu0 0.0
    %1546 = vmatprep.subr.mxu0 0.0
    %1547 = vmatpush1.msra.mxu0 0.0
    %1548 = vmatprep.subr.mxu0 0.0
    %1549 = vmatpush1.msra.mxu0 0.0
    %1550 = vmatprep.subr.mxu0 0.0
    %1551 = vmatpush1.msra.mxu0 0.0
    %1552 = vmatprep.subr.mxu0 0.0
    %1553 = vmatpush1.msra.mxu0 0.0
    %1554 = vmatprep.subr.mxu0 0.0
    %1555 = vmatpush1.msra.mxu0 0.0
    %1556 = vmatprep.subr.mxu0 0.0
    %1557 = vmatpush1.msra.mxu0 0.0
    %1558 = vmatprep.subr.mxu0 0.0
    %1559 = vmatpush1.msra.mxu0 0.0
    %1560 = vmatprep.subr.mxu0 0.0
    %1561 = vmatpush1.msra.mxu0 0.0
    %1562 = vmatprep.subr.mxu0 0.0
    %1563 = vmatpush1.msra.mxu0 0.0
    %1564 = vmatprep.subr.mxu0 0.0
    %1565 = vmatpush1.msra.mxu0 0.0
    %1566 = vmatprep.subr.mxu0 0.0
    %1567 = vmatpush1.msra.mxu0 0.0
    %1568 = vmatprep.subr.mxu0 0.0
    %1569 = vmatpush1.msra.mxu0 0.0
    %1570 = vmatprep.subr.mxu0 0.0
    %1571 = vmatpush1.msra.mxu0 0.0
    %1572 = vmatprep.subr.mxu0 0.0
    %1573 = vmatpush1.msra.mxu0 0.0
    %1574 = vmatprep.subr.mxu0 0.0
    %1575 = vmatpush1.msra.mxu0 0.0
    %1576 = vmatprep.mubr.f32.mxu0 0.0
    %1577 = vmatmul.mubr.f32.gmra.mrb[0].mxu0 %v1510
    %v1578 = vpop.f32.mrb[0].mxu0
    %v1579 = vadd.f32 0.0, %v1578
    %v1580 = vpop.f32.mrb[0].mxu0
    %1581 = vdwg.mxu0
    %v1583 = vrot.slane %v1579, 2
    %v1584 = vrot.slane %v1579, 3
    %v1587 = vadd.f32 %v294, %v1583
    %v1588 = vadd.f32 %v299, %v1584
    %v1589 = vtanh.pop %v1587
    %v1590 = vtanh.pop %v1588
    %v1593 = vrot.slane %v1589, 6
    %v1594 = vrot.slane %v1590, 5
    %v1595 = vsel %vm396, %v1594, %v1593
    %v1596 = vsel %vm311, %v1595, 0
    %1598 = vmatprep.subr.mxu0 0.0
    %1599 = vmatpush1.msra.mxu0 %v306
    %1600 = vmatprep.subr.mxu0 0.0
    %1601 = vmatpush1.msra.mxu0 %v307
    %1602 = vmatprep.subr.mxu0 0.0
    %1603 = vmatpush1.msra.mxu0 %v308
    %1604 = vmatprep.subr.mxu0 0.0
    %1605 = vmatpush1.msra.mxu0 %v309
    %1606 = vmatprep.subr.mxu0 0.0
    %1607 = vmatpush1.msra.mxu0 0.0
    %1608 = vmatprep.subr.mxu0 0.0
    %1609 = vmatpush1.msra.mxu0 0.0
    %1610 = vmatprep.subr.mxu0 0.0
    %1611 = vmatpush1.msra.mxu0 0.0
    %1612 = vmatprep.subr.mxu0 0.0
    %1613 = vmatpush1.msra.mxu0 0.0
    %1614 = vmatprep.subr.mxu0 0.0
    %1615 = vmatpush1.msra.mxu0 0.0
    %1616 = vmatprep.subr.mxu0 0.0
    %1617 = vmatpush1.msra.mxu0 0.0
    %1618 = vmatprep.subr.mxu0 0.0
    %1619 = vmatpush1.msra.mxu0 0.0
    %1620 = vmatprep.subr.mxu0 0.0
    %1621 = vmatpush1.msra.mxu0 0.0
    %1622 = vmatprep.subr.mxu0 0.0
    %1623 = vmatpush1.msra.mxu0 0.0
    %1624 = vmatprep.subr.mxu0 0.0
    %1625 = vmatpush1.msra.mxu0 0.0
    %1626 = vmatprep.subr.mxu0 0.0
    %1627 = vmatpush1.msra.mxu0 0.0
    %1628 = vmatprep.subr.mxu0 0.0
    %1629 = vmatpush1.msra.mxu0 0.0
    %1630 = vmatprep.subr.mxu0 0.0
    %1631 = vmatpush1.msra.mxu0 0.0
    %1632 = vmatprep.subr.mxu0 0.0
    %1633 = vmatpush1.msra.mxu0 0.0
    %1634 = vmatprep.subr.mxu0 0.0
    %1635 = vmatpush1.msra.mxu0 0.0
    %1636 = vmatprep.subr.mxu0 0.0
    %1637 = vmatpush1.msra.mxu0 0.0
    %1638 = vmatprep.subr.mxu0 0.0
    %1639 = vmatpush1.msra.mxu0 0.0
    %1640 = vmatprep.subr.mxu0 0.0
    %1641 = vmatpush1.msra.mxu0 0.0
    %1642 = vmatprep.subr.mxu0 0.0
    %1643 = vmatpush1.msra.mxu0 0.0
    %1644 = vmatprep.subr.mxu0 0.0
    %1645 = vmatpush1.msra.mxu0 0.0
    %1646 = vmatprep.subr.mxu0 0.0
    %1647 = vmatpush1.msra.mxu0 0.0
    %1648 = vmatprep.subr.mxu0 0.0
    %1649 = vmatpush1.msra.mxu0 0.0
    %1650 = vmatprep.subr.mxu0 0.0
    %1651 = vmatpush1.msra.mxu0 0.0
    %1652 = vmatprep.subr.mxu0 0.0
    %1653 = vmatpush1.msra.mxu0 0.0
    %1654 = vmatprep.subr.mxu0 0.0
    %1655 = vmatpush1.msra.mxu0 0.0
    %1656 = vmatprep.subr.mxu0 0.0
    %1657 = vmatpush1.msra.mxu0 0.0
    %1658 = vmatprep.subr.mxu0 0.0
    %1659 = vmatpush1.msra.mxu0 0.0
    %1660 = vmatprep.subr.mxu0 0.0
    %1661 = vmatpush1.msra.mxu0 0.0
    %1662 = vmatprep.mubr.f32.mxu0 0.0
    %1663 = vmatmul.mubr.f32.gmra.mrb[0].mxu0 %v1596
    %v1664 = vpop.f32.mrb[0].mxu0
    %v1665 = vadd.f32 0.0, %v1664
    %v1666 = vpop.f32.mrb[0].mxu0
    %1667 = vdwg.mxu0
    %v1669 = vrot.slane %v1665, 1
    %v1670 = vrot.slane %v1665, 2
    %v1673 = vadd.f32 %v294, %v1669
    %v1674 = vadd.f32 %v299, %v1670
    %v1675 = vtanh.pop %v1673
    %v1676 = vtanh.pop %v1674
    %v1678 = vrot.slane %v1160, 7
    %v1679 = vrot.slane %v1161, 6
    %vm1680 = vcmask 1043459
    %v1681 = vsel %vm1680, %v1679, %v1678
    %v1683 = vrot.slane %v1245, 6
    %v1684 = vrot.slane %v1246, 5
    %vm1685 = vcmask 1045509
    %v1686 = vsel %vm1685, %v1684, %v1683
    %v1688 = vrot.slane %v1331, 5
    %v1689 = vrot.slane %v1332, 4
    %vm1690 = vcmask 1047559
    %v1691 = vsel %vm1690, %v1689, %v1688
    %v1694 = vrot.slane %v1503, 3
    %v1695 = vrot.slane %v1504, 2
    %v1696 = vsel %vm1680, %v1695, %v1694
    %v1698 = vrot.slane %v1589, 2
    %v1699 = vrot.slane %v1590, 1
    %v1700 = vsel %vm1685, %v1699, %v1698
    %v1704 = vrot.slane %v1675, 1
    %v1705 = vsel %vm1690, %v1676, %v1704
    %vm1707 = vcmask 1041408
    %v1708 = vsel %vm1707, %v1081, %v1681
    %vm1709 = vcmask 1043456
    %v1710 = vsel %vm1709, %v1708, %v1686
    %vm1711 = vcmask 1045504
    %v1712 = vsel %vm1711, %v1710, %v1691
    %v1713 = vsel %vm1707, %v1423, %v1696
    %v1714 = vsel %vm1709, %v1713, %v1700
    %v1715 = vsel %vm1711, %v1714, %v1705
    %v1716 = vld [vmem:[%s9] sm:$0xff]
    %v1717 = vld [vmem:[%s9 + $0x8] sm:$0xff]
    %v1718 = vld [vmem:[%s9 + $0x10] sm:$0xff]
    %v1719 = vld [vmem:[%s9 + $0x18] sm:$0xff]
    %v1720 = vld [vmem:[%s10] sm:$0x1]
    %v1722 = vlaneseq
    %v1723 = vshrl.u32 %v1722, 7
    %v1724 = vsub.s32 0, %v1723
    %v1725 = vrot.slane %v1720, %v1724
    %v1728 = vsel %vm311, %v1712, 0
    %v1731 = vsel %vm311, %v1715, 0
    %1733 = vmatprep.subr.mxu0 0.0
    %1734 = vmatpush1.msra.mxu0 %v1716
    %1735 = vmatprep.subr.mxu0 0.0
    %1736 = vmatpush1.msra.mxu0 %v1717
    %1737 = vmatprep.subr.mxu0 0.0
    %1738 = vmatpush1.msra.mxu0 %v1718
    %1739 = vmatprep.subr.mxu0 0.0
    %1740 = vmatpush1.msra.mxu0 %v1719
    %1741 = vmatprep.subr.mxu0 0.0
    %1742 = vmatpush1.msra.mxu0 0.0
    %1743 = vmatprep.subr.mxu0 0.0
    %1744 = vmatpush1.msra.mxu0 0.0
    %1745 = vmatprep.subr.mxu0 0.0
    %1746 = vmatpush1.msra.mxu0 0.0
    %1747 = vmatprep.subr.mxu0 0.0
    %1748 = vmatpush1.msra.mxu0 0.0
    %1749 = vmatprep.subr.mxu0 0.0
    %1750 = vmatpush1.msra.mxu0 0.0
    %1751 = vmatprep.subr.mxu0 0.0
    %1752 = vmatpush1.msra.mxu0 0.0
    %1753 = vmatprep.subr.mxu0 0.0
    %1754 = vmatpush1.msra.mxu0 0.0
    %1755 = vmatprep.subr.mxu0 0.0
    %1756 = vmatpush1.msra.mxu0 0.0
    %1757 = vmatprep.subr.mxu0 0.0
    %1758 = vmatpush1.msra.mxu0 0.0
    %1759 = vmatprep.subr.mxu0 0.0
    %1760 = vmatpush1.msra.mxu0 0.0
    %1761 = vmatprep.subr.mxu0 0.0
    %1762 = vmatpush1.msra.mxu0 0.0
    %1763 = vmatprep.subr.mxu0 0.0
    %1764 = vmatpush1.msra.mxu0 0.0
    %1765 = vmatprep.subr.mxu0 0.0
    %1766 = vmatpush1.msra.mxu0 0.0
    %1767 = vmatprep.subr.mxu0 0.0
    %1768 = vmatpush1.msra.mxu0 0.0
    %1769 = vmatprep.subr.mxu0 0.0
    %1770 = vmatpush1.msra.mxu0 0.0
    %1771 = vmatprep.subr.mxu0 0.0
    %1772 = vmatpush1.msra.mxu0 0.0
    %1773 = vmatprep.subr.mxu0 0.0
    %1774 = vmatpush1.msra.mxu0 0.0
    %1775 = vmatprep.subr.mxu0 0.0
    %1776 = vmatpush1.msra.mxu0 0.0
    %1777 = vmatprep.subr.mxu0 0.0
    %1778 = vmatpush1.msra.mxu0 0.0
    %1779 = vmatprep.subr.mxu0 0.0
    %1780 = vmatpush1.msra.mxu0 0.0
    %1781 = vmatprep.subr.mxu0 0.0
    %1782 = vmatpush1.msra.mxu0 0.0
    %1783 = vmatprep.subr.mxu0 0.0
    %1784 = vmatpush1.msra.mxu0 0.0
    %1785 = vmatprep.subr.mxu0 0.0
    %1786 = vmatpush1.msra.mxu0 0.0
    %1787 = vmatprep.subr.mxu0 0.0
    %1788 = vmatpush1.msra.mxu0 0.0
    %1789 = vmatprep.subr.mxu0 0.0
    %1790 = vmatpush1.msra.mxu0 0.0
    %1791 = vmatprep.subr.mxu0 0.0
    %1792 = vmatpush1.msra.mxu0 0.0
    %1793 = vmatprep.subr.mxu0 0.0
    %1794 = vmatpush1.msra.mxu0 0.0
    %1795 = vmatprep.subr.mxu0 0.0
    %1796 = vmatpush1.msra.mxu0 0.0
    %1797 = vmatprep.mubr.f32.mxu0 0.0
    %1798 = vmatmul.mubr.f32.gmra.mrb[0].mxu0 %v1728
    %v1799 = vpop.f32.mrb[0].mxu0
    %v1800 = vadd.f32 %v1725, %v1799
    %v1801 = vpop.f32.mrb[0].mxu0
    %1802 = vmatprep.mubr.f32.mxu0 0.0
    %1803 = vmatmul.mubr.f32.gmra.mrb[0].mxu0 %v1731
    %v1804 = vpop.f32.mrb[0].mxu0
    %v1805 = vadd.f32 %v1725, %v1804
    %v1806 = vpop.f32.mrb[0].mxu0
    %1807 = vdwg.mxu0
    %1808 = vst.msk [vmem:[#allocation13] sm:$0xff] %vm128, %v1800
    %1809 = vst.msk [vmem:[#allocation13 + $0x8] sm:$0xff] %vm128, %v1805
    // Predicated region
    $region70: #{tpu_custom_call.1} parent=1 // pred_check
      _
    $region71: #{tpu_custom_call.1} parent=1 // pred_check_branch
      %1811 = sbr.rel (0) target = $region73
    $region72: #{tpu_custom_call.1} parent=1 // pred_region
      %s1813 = ssub.s32 256, 256
      %1814 = vsyncadd [#allocation4], %s1813
      %s1815 = sshll.u32 [#allocation13], 4
      %s1816 = int_to_ptr.vmem [resolvable:$true] %s1815
      %1821 = dma.vmem_to_hbm [thread:$0]  %s1816, 256, %s11, [#allocation4], 128, 128, 8
    $region73: #{tpu_custom_call.1} parent=1 // pred_fallthru
      _
    // Predicated region
    $region74: #{tpu_custom_call.1} parent=1 // pred_check
      _
    $region75: #{tpu_custom_call.1} parent=1 // pred_check_branch
      %1823 = sbr.rel (0) target = $region77
    $region76: #{tpu_custom_call.1} parent=1 // pred_region
      %1824 = dma.done [#allocation4], 256
    $region77: #{tpu_custom_call.1} parent=1 // pred_fallthru
      _
    %1825 = vsyncpa [#allocation3], 1
    %1826 = vsyncpa [#allocation6], 1
    %1827 = vsyncpa [#allocation9], 1
    %1828 = vsyncpa [#allocation12], 1
    %1829 = vsyncpa [#allocation4], 1

</llo_original>
